<compile_context>
chip_gen: v7x
topology: tpu7x:2x2x1
jax: 0.10.0
libtpu: 0.0.40
codegen_flags: <defaults>
</compile_context>

<pallas_src>
import jax
import jax.numpy as jnp
from jax import lax
from jax.experimental import pallas as pl
from jax.experimental.pallas import tpu as pltpu

# ---- hyperparameters mirroring SE3Transformer.__init__ ----------------------
NUM_LAYERS = 2            # num_layers
NUM_CHANNELS = 16         # fibers['mid'] multiplicity
NUM_DEGREES = 4
OUT_FIBER = NUM_DEGREES * NUM_CHANNELS     # 64 -> matches nn.Linear(64, 128)
FC_HIDDEN = 128
OUTPUT_CHANNELS = 1
EPS = 1e-6

C = NUM_CHANNELS

# packed weight slab geometry (bf16 slabs; full-array blocks so always legal)
LAYER_SLAB_ROWS = 96      # rows 0:64 = W_sel (64,80) block, rows 64:96 = W_gate (32,32)
TAIL_SLAB_ROWS = 200      # rows 0:64 = [W_head|W_self], 64:192 = wf1^T, 192:200 = wf2 row
BIAS_COLS = 8             # f32 column-vector biases

GRAPHS_PER_STEP = 2       # graphs fused per grid step (stacked along lanes)


def se3_kernel(a_ref, feat_ref, layer_ref, tail_ref, bias_ref, out_ref):
    G, n_pad, _ = a_ref.shape                 # static ref shapes
    L = G * n_pad                             # stacked lane width (full 128-lane tiles)
    f32, bf16 = jnp.float32, jnp.bfloat16

    # ---- expand compact (G, 8, n_pad) features to channels-on-sublanes /
    # nodes-on-lanes working tiles (C, L) ------------------------------------
    feat = feat_ref[...]                                           # (G, 8, n_pad) f32
    f = jnp.concatenate([feat[g] for g in range(G)], axis=1)       # (8, L)
    zpad = jnp.zeros((C - 1, L), f32)
    h0 = jnp.concatenate([f[0:1, :], zpad], axis=0)                # degree-0 (mass)
    hx = jnp.concatenate([f[1:2, :], zpad], axis=0)                # degree-1 components
    hy = jnp.concatenate([f[2:3, :], zpad], axis=0)
    hz = jnp.concatenate([f[3:4, :], zpad], axis=0)

    def agg(S):
        # per-graph neighbor aggregation: M^T[:, g] = S^T[:, g-block] @ A^T[g]
        # (bf16 operands, f32 accumulation; one lane-dense MXU call per graph)
        Sb = S.astype(bf16)
        parts = [jnp.dot(Sb[:, g * n_pad:(g + 1) * n_pad], a_ref[g],
                         preferred_element_type=f32) for g in range(G)]
        return jnp.concatenate(parts, axis=1)

    # ---- Gblock[:-1] : NUM_LAYERS x (GSE3Res -> GNormSE3) -------------------
    for l in range(NUM_LAYERS):
        lw = layer_ref[l]                                 # (96, 128) bf16 slab
        w_sel = lw[0:4 * C, 0:5 * C]                      # fused (64, 80) self-interaction
        w_gate = lw[4 * C:6 * C, 0:2 * C]                 # fused (32, 32) gate weights
        b_sel = bias_ref[0:4 * C, 2 * l:2 * l + 1]        # (64,1) f32, rows 0:16 = b0
        b_gate = bias_ref[0:2 * C, 2 * l + 1:2 * l + 2]   # (32,1) f32 = [g0b; g1b]

        # invariant degree-1 channel norms (EUP rsqrt); exactly 0 on pad channels
        sq = hx * hx + hy * hy + hz * hz
        rn = lax.rsqrt(sq + EPS)
        n1 = sq * rn

        # GSE3Res (simplified): ONE fused block matmul replaces 5 tiny K=16 passes
        X = jnp.concatenate([h0, n1, hx, hy, hz], axis=0).astype(bf16)     # (80, L)
        S = jnp.dot(w_sel, X, preferred_element_type=f32) + b_sel          # (64, L)
        H = agg(S) + S                                    # neighbor aggregation + skip
        h0 = H[0:C]
        hx = H[C:2 * C]
        hy = H[2 * C:3 * C]
        hz = H[3 * C:4 * C]
        # TODO(synk): GSE3Res attention heads / SH-basis-weighted kernels omitted
        # (source not provided).

        # GNormSE3: norm-gated nonlinearity, both gate matmuls fused into one
        n0 = jnp.abs(h0)
        u0 = h0 * pl.reciprocal(n0 + EPS, approx=True)    # EUP, not VALU divide
        sq = hx * hx + hy * hy + hz * hz
        rn = lax.rsqrt(sq + EPS)
        n1 = sq * rn
        Nc = jnp.concatenate([n0, n1], axis=0).astype(bf16)                # (32, L)
        phi = jnp.maximum(
            jnp.dot(w_gate, Nc, preferred_element_type=f32) + b_gate, 0.0)
        h0 = phi[0:C] * u0
        inv = phi[C:2 * C] * rn                           # phi1 / ||v||
        hx = inv * hx
        hy = inv * hy
        hz = inv * hz

    # ---- final GConvSE3 (self_interaction=True); forward consumes only h['0'] ----
    tw = tail_ref[...]                                    # (200, 128) bf16 slab
    w_head = tw[0:4 * C, 0:2 * C]                         # (64, 32) = [wk0^T | wk1^T]
    w_self = tw[0:4 * C, 2 * C:3 * C]                     # (64, 16) = wself^T
    b_self = bias_ref[0:4 * C, 4:5]                       # (64, 1)
    sq = hx * hx + hy * hy + hz * hz
    n1 = sq * lax.rsqrt(sq + EPS)
    Hin = jnp.concatenate([h0, n1], axis=0).astype(bf16)                   # (32, L)
    msg = jnp.dot(w_head, Hin, preferred_element_type=f32)                 # (64, L)
    h = (agg(msg)
         + jnp.dot(w_self, h0.astype(bf16), preferred_element_type=f32)
         + b_self)
    # TODO(synk): degree>0 output fibers of GConvSE3 are never consumed.

    # ---- FCblock: Linear(64,128) -> ReLU -> Linear(128, out) ----------------
    wf1 = tw[4 * C:4 * C + FC_HIDDEN, 0:4 * C]            # (128, 64) = wf1^T
    wf2 = tw[4 * C + FC_HIDDEN:4 * C + FC_HIDDEN + 8, :]  # (8, 128); row 0 = wf2^T
    bf1 = bias_ref[0:FC_HIDDEN, 5:6]                      # (128, 1)
    bf2 = bias_ref[0:8, 6:7]                              # (8, 1); row 0 real
    z = jnp.maximum(
        jnp.dot(wf1, h.astype(bf16), preferred_element_type=f32) + bf1, 0.0)
    out = jnp.dot(wf2, z.astype(bf16), preferred_element_type=f32) + bf2   # (8, L)

    # compact transposed writeback: (8, n_pad) per graph, row 0 is the real output
    for g in range(G):
        out_ref[g, :, :] = out[:, g * n_pad:(g + 1) * n_pad]


def init_params(key):
    """Build the packed weight slabs (bf16) and the f32 bias slab."""
    layer_w = jnp.zeros((NUM_LAYERS, LAYER_SLAB_ROWS, 128), jnp.float32)
    bias_w = jnp.zeros((128, BIAS_COLS), jnp.float32)

    c_in = 1                       # atom_feature_size channels feeding layer 0
    for l in range(NUM_LAYERS):
        key, k0, k1, k2, k3, k4, k5 = jax.random.split(key, 7)
        w0a = jax.random.normal(k0, (c_in, C), jnp.float32) * 0.3
        w0b = jax.random.normal(k1, (c_in, C), jnp.float32) * 0.3
        w1 = jax.random.normal(k2, (c_in, C), jnp.float32) * 0.3
        g0w = jax.random.normal(k3, (C, C), jnp.float32) * 0.3
        g1w = jax.random.normal(k4, (C, C), jnp.float32) * 0.3
        b0 = jax.random.normal(k5, (C,), jnp.float32) * 0.1
        # fused self-interaction block W_sel (64, 80), stored as out-channels x in-channels
        # column blocks match X = [h0 | n1 | hx | hy | hz]
        layer_w = layer_w.at[l, 0:C, 0:c_in].set(w0a.T)
        layer_w = layer_w.at[l, 0:C, C:C + c_in].set(w0b.T)
        layer_w = layer_w.at[l, C:2 * C, 2 * C:2 * C + c_in].set(w1.T)
        layer_w = layer_w.at[l, 2 * C:3 * C, 3 * C:3 * C + c_in].set(w1.T)
        layer_w = layer_w.at[l, 3 * C:4 * C, 4 * C:4 * C + c_in].set(w1.T)
        # fused gate block W_gate (32, 32) = blockdiag(g0w^T, g1w^T)
        layer_w = layer_w.at[l, 4 * C:5 * C, 0:C].set(g0w.T)
        layer_w = layer_w.at[l, 5 * C:6 * C, C:2 * C].set(g1w.T)
        # f32 bias columns: col 2l = b_sel (b0 in rows 0:16), col 2l+1 = [g0b; g1b]
        bias_w = bias_w.at[0:C, 2 * l].set(b0)
        bias_w = bias_w.at[0:C, 2 * l + 1].set(0.5)
        bias_w = bias_w.at[C:2 * C, 2 * l + 1].set(0.5)
        c_in = C

    key, k1, k2, k3, k4, k5 = jax.random.split(key, 6)
    wk0 = jax.random.normal(k1, (C, OUT_FIBER), jnp.float32) * 0.2
    wk1 = jax.random.normal(k2, (C, OUT_FIBER), jnp.float32) * 0.2
    wself = jax.random.normal(k3, (C, OUT_FIBER), jnp.float32) * 0.2
    wf1 = jax.random.normal(k4, (OUT_FIBER, FC_HIDDEN), jnp.float32) * 0.1
    wf2 = jax.random.normal(k5, (FC_HIDDEN, OUTPUT_CHANNELS), jnp.float32) * 0.1

    tail_w = jnp.zeros((TAIL_SLAB_ROWS, 128), jnp.float32)
    tail_w = tail_w.at[0:OUT_FIBER, 0:C].set(wk0.T)                         # W_head | wk0^T
    tail_w = tail_w.at[0:OUT_FIBER, C:2 * C].set(wk1.T)                     # W_head | wk1^T
    tail_w = tail_w.at[0:OUT_FIBER, 2 * C:3 * C].set(wself.T)               # W_self
    tail_w = tail_w.at[OUT_FIBER:OUT_FIBER + FC_HIDDEN, 0:OUT_FIBER].set(wf1.T)
    tail_w = tail_w.at[OUT_FIBER + FC_HIDDEN, :].set(wf2[:, 0])             # wf2^T row
    # bself (bias col 4), bf1 (col 5), bf2 (col 6) stay zero (nn.Linear zero-bias init here)

    return (layer_w.astype(jnp.bfloat16), tail_w.astype(jnp.bfloat16), bias_w)


def se3_transformer_forward(mass, velocity, adjacency, params):
    """mass: (B,N), velocity: (B,N,3), adjacency: (B,N,N) row-normalized."""
    layer_w, tail_w, bias_w = params
    B, N = mass.shape

    # nodes live on the lane axis -> pad node dim to a multiple of 128
    n_pad = ((N + 127) // 128) * 128
    # batch padded to a multiple of GRAPHS_PER_STEP with zero graphs (sliced off below)
    G = GRAPHS_PER_STEP
    b_pad = ((B + G - 1) // G) * G

    # compact feature block (B, 8, n_pad): rows = [mass, vx, vy, vz, 0, 0, 0, 0]
    feat = jnp.zeros((b_pad, 8, n_pad), jnp.float32)
    feat = feat.at[:B, 0, :N].set(mass.astype(jnp.float32))
    feat = feat.at[:B, 1, :N].set(velocity[..., 0].astype(jnp.float32))
    feat = feat.at[:B, 2, :N].set(velocity[..., 1].astype(jnp.float32))
    feat = feat.at[:B, 3, :N].set(velocity[..., 2].astype(jnp.float32))

    # transposed, zero-padded, bf16 adjacency (M^T = S^T @ A^T); bf16 halves A DMA bytes
    a_t = jnp.zeros((b_pad, n_pad, n_pad), jnp.float32)
    a_t = a_t.at[:B, :N, :N].set(jnp.swapaxes(adjacency, -1, -2).astype(jnp.float32))
    a_t = a_t.astype(jnp.bfloat16)

    fn = pl.pallas_call(
        se3_kernel,
        out_shape=jax.ShapeDtypeStruct((b_pad, 8, n_pad), jnp.float32),
        grid_spec=pltpu.PrefetchScalarGridSpec(
            num_scalar_prefetch=0,
            grid=(b_pad // G,),                  # G graphs per grid step
            in_specs=[
                pl.BlockSpec((G, n_pad, n_pad), lambda b: (b, 0, 0)),
                pl.BlockSpec((G, 8, n_pad), lambda b: (b, 0, 0)),
                # weight slabs: constant index_map -> resident, no per-step re-DMA
                pl.BlockSpec((NUM_LAYERS, LAYER_SLAB_ROWS, 128), lambda b: (0, 0, 0)),
                pl.BlockSpec((TAIL_SLAB_ROWS, 128), lambda b: (0, 0)),
                pl.BlockSpec((128, BIAS_COLS), lambda b: (0, 0)),
            ],
            out_specs=pl.BlockSpec((G, 8, n_pad), lambda b: (b, 0, 0)),
        ),
        compiler_params=pltpu.CompilerParams(
            dimension_semantics=("parallel",),   # megacore: grid steps split across TCs
            vmem_limit_bytes=8 * 1024 * 1024,    # real footprint ~1 MiB at n_pad=128
        ),
    )
    out = fn(a_t, feat, layer_w, tail_w, bias_w)     # (b_pad, 8, n_pad) f32
    # row 0 of each transposed (8, n_pad) block is the real scalar output
    return out[:B, 0, :N][..., None]                 # (B, N, OUTPUT_CHANNELS)


if __name__ == "__main__":
    # 16 graphs -> 8 grid steps of 2 graphs -> 4 pipelined steps per TensorCore on v7x
    B, N = 16, 120

    key = jax.random.PRNGKey(0)
    k_mass, k_vel, k_param = jax.random.split(key, 3)

    mass = jax.random.normal(k_mass, (B, N), jnp.float32)          # G.ndata['mass']
    velocity = jax.random.normal(k_vel, (B, N, 3), jnp.float32)    # G.ndata['velocity']

    # deterministic ring graph, mean-normalized adjacency (2 neighbors per node)
    idx = jnp.arange(N)
    ring = (jnp.zeros((N, N), jnp.float32)
            .at[idx, (idx + 1) % N].set(0.5)
            .at[idx, (idx - 1) % N].set(0.5))
    adjacency = jnp.broadcast_to(ring, (B, N, N))

    params = init_params(k_param)

    out = se3_transformer_forward(mass, velocity, adjacency, params)
    out = jax.block_until_ready(out)
    assert out.shape == (B, N, OUTPUT_CHANNELS)
    print("KERNEL_OK")
</pallas_src>

<mosaic_0001>
module attributes {stable_mosaic.version = 11 : i64} {
  func.func @se3_kernel(%arg0: i32, %arg1: memref<2x128x128xbf16, #tpu.memory_space<vmem>>, %arg2: memref<2x8x128xf32, #tpu.memory_space<vmem>>, %arg3: memref<2x96x128xbf16, #tpu.memory_space<vmem>>, %arg4: memref<200x128xbf16, #tpu.memory_space<vmem>>, %arg5: memref<128x8xf32, #tpu.memory_space<vmem>>, %arg6: memref<2x8x128xf32, #tpu.memory_space<vmem>>) attributes {dimension_semantics = [#tpu.dimension_semantics<parallel>], iteration_bounds = array<i64: 8>, scalar_prefetch = 0 : i64, scratch_operands = 0 : i64, tpu.core_type = #tpu.core_type<tc>, window_params = [{transform_indices = @transform_0, window_bounds = array<i64: 2, 128, 128>}, {transform_indices = @transform_1, window_bounds = array<i64: 2, 8, 128>}, {pipeline_mode = #tpu.pipeline_mode<synchronous>, transform_indices = @transform_2, window_bounds = array<i64: 2, 96, 128>}, {pipeline_mode = #tpu.pipeline_mode<synchronous>, transform_indices = @transform_3, window_bounds = array<i64: 200, 128>}, {pipeline_mode = #tpu.pipeline_mode<synchronous>, transform_indices = @transform_4, window_bounds = array<i64: 128, 8>}, {transform_indices = @transform_5, window_bounds = array<i64: 2, 8, 128>}]} {
    %c0 = arith.constant 0 : index
    %c0_0 = arith.constant 0 : index
    %c0_1 = arith.constant 0 : index
    %0 = vector.load %arg2[%c0, %c0_0, %c0_1] : memref<2x8x128xf32, #tpu.memory_space<vmem>>, vector<2x8x128xf32>
    %1 = vector.extract_strided_slice %0 {offsets = [0, 0, 0], sizes = [1, 8, 128], strides = [1, 1, 1]} : vector<2x8x128xf32> to vector<1x8x128xf32>
    %2 = vector.shape_cast %1 : vector<1x8x128xf32> to vector<8x128xf32>
    %3 = vector.extract_strided_slice %0 {offsets = [1, 0, 0], sizes = [1, 8, 128], strides = [1, 1, 1]} : vector<2x8x128xf32> to vector<1x8x128xf32>
    %4 = vector.shape_cast %3 : vector<1x8x128xf32> to vector<8x128xf32>
    %5 = tpu.concatenate %2, %4 in 1 : vector<8x128xf32>, vector<8x128xf32> -> vector<8x256xf32>
    %cst = arith.constant 0.000000e+00 : f32
    %6 = vector.broadcast %cst : f32 to vector<15x256xf32>
    %7 = vector.extract_strided_slice %5 {offsets = [0, 0], sizes = [1, 256], strides = [1, 1]} : vector<8x256xf32> to vector<1x256xf32>
    %8 = tpu.concatenate %7, %6 in 0 : vector<1x256xf32>, vector<15x256xf32> -> vector<16x256xf32>
    %9 = vector.extract_strided_slice %5 {offsets = [1, 0], sizes = [1, 256], strides = [1, 1]} : vector<8x256xf32> to vector<1x256xf32>
    %10 = tpu.concatenate %9, %6 in 0 : vector<1x256xf32>, vector<15x256xf32> -> vector<16x256xf32>
    %11 = vector.extract_strided_slice %5 {offsets = [2, 0], sizes = [1, 256], strides = [1, 1]} : vector<8x256xf32> to vector<1x256xf32>
    %12 = tpu.concatenate %11, %6 in 0 : vector<1x256xf32>, vector<15x256xf32> -> vector<16x256xf32>
    %13 = vector.extract_strided_slice %5 {offsets = [3, 0], sizes = [1, 256], strides = [1, 1]} : vector<8x256xf32> to vector<1x256xf32>
    %14 = tpu.concatenate %13, %6 in 0 : vector<1x256xf32>, vector<15x256xf32> -> vector<16x256xf32>
    %c0_2 = arith.constant 0 : index
    %c0_3 = arith.constant 0 : index
    %c0_4 = arith.constant 0 : index
    %15 = vector.load %arg3[%c0_2, %c0_3, %c0_4] : memref<2x96x128xbf16, #tpu.memory_space<vmem>>, vector<1x96x128xbf16>
    %16 = vector.shape_cast %15 : vector<1x96x128xbf16> to vector<96x128xbf16>
    %17 = vector.extract_strided_slice %16 {offsets = [0, 0], sizes = [64, 80], strides = [1, 1]} : vector<96x128xbf16> to vector<64x80xbf16>
    %18 = vector.extract_strided_slice %16 {offsets = [64, 0], sizes = [32, 32], strides = [1, 1]} : vector<96x128xbf16> to vector<32x32xbf16>
    %c0_5 = arith.constant 0 : index
    %c0_6 = arith.constant 0 : index
    %19 = vector.load %arg5[%c0_5, %c0_6] : memref<128x8xf32, #tpu.memory_space<vmem>>, vector<64x1xf32>
    %c0_7 = arith.constant 0 : index
    %c1 = arith.constant 1 : index
    %20 = vector.load %arg5[%c0_7, %c1] : memref<128x8xf32, #tpu.memory_space<vmem>>, vector<32x1xf32>
    %21 = arith.mulf %10, %10 : vector<16x256xf32>
    %22 = arith.mulf %12, %12 : vector<16x256xf32>
    %23 = arith.addf %21, %22 : vector<16x256xf32>
    %24 = arith.mulf %14, %14 : vector<16x256xf32>
    %25 = arith.addf %23, %24 : vector<16x256xf32>
    %cst_8 = arith.constant 9.99999997E-7 : f32
    %26 = vector.broadcast %cst_8 : f32 to vector<16x256xf32>
    %27 = arith.addf %25, %26 : vector<16x256xf32>
    %28 = math.rsqrt %27 : vector<16x256xf32>
    %29 = arith.mulf %25, %28 : vector<16x256xf32>
    %30 = tpu.concatenate %8, %29, %10, %12, %14 in 0 : vector<16x256xf32>, vector<16x256xf32>, vector<16x256xf32>, vector<16x256xf32>, vector<16x256xf32> -> vector<80x256xf32>
    %31 = arith.truncf %30 : vector<80x256xf32> to vector<80x256xbf16>
    %cst_9 = arith.constant dense<0.000000e+00> : vector<64x256xf32>
    %32 = tpu.matmul %17, %31, %cst_9 {dimension_numbers = #tpu.dot_dimension_numbers<[1], [0], [0], [1], [0, 0, 1, 1], [], []>} : vector<64x80xbf16>, vector<80x256xbf16>, vector<64x256xf32> -> vector<64x256xf32>
    %33 = vector.broadcast %19 : vector<64x1xf32> to vector<64x256xf32>
    %34 = arith.addf %32, %33 : vector<64x256xf32>
    %35 = arith.truncf %34 : vector<64x256xf32> to vector<64x256xbf16>
    %36 = vector.extract_strided_slice %35 {offsets = [0, 0], sizes = [64, 128], strides = [1, 1]} : vector<64x256xbf16> to vector<64x128xbf16>
    %c0_10 = arith.constant 0 : index
    %c0_11 = arith.constant 0 : index
    %c0_12 = arith.constant 0 : index
    %37 = vector.load %arg1[%c0_10, %c0_11, %c0_12] : memref<2x128x128xbf16, #tpu.memory_space<vmem>>, vector<1x128x128xbf16>
    %38 = vector.shape_cast %37 : vector<1x128x128xbf16> to vector<128x128xbf16>
    %cst_13 = arith.constant dense<0.000000e+00> : vector<64x128xf32>
    %39 = tpu.matmul %36, %38, %cst_13 {dimension_numbers = #tpu.dot_dimension_numbers<[1], [0], [0], [1], [0, 0, 1, 1], [], []>} : vector<64x128xbf16>, vector<128x128xbf16>, vector<64x128xf32> -> vector<64x128xf32>
    %40 = vector.extract_strided_slice %35 {offsets = [0, 128], sizes = [64, 128], strides = [1, 1]} : vector<64x256xbf16> to vector<64x128xbf16>
    %c1_14 = arith.constant 1 : index
    %c0_15 = arith.constant 0 : index
    %c0_16 = arith.constant 0 : index
    %41 = vector.load %arg1[%c1_14, %c0_15, %c0_16] : memref<2x128x128xbf16, #tpu.memory_space<vmem>>, vector<1x128x128xbf16>
    %42 = vector.shape_cast %41 : vector<1x128x128xbf16> to vector<128x128xbf16>
    %cst_17 = arith.constant dense<0.000000e+00> : vector<64x128xf32>
    %43 = tpu.matmul %40, %42, %cst_17 {dimension_numbers = #tpu.dot_dimension_numbers<[1], [0], [0], [1], [0, 0, 1, 1], [], []>} : vector<64x128xbf16>, vector<128x128xbf16>, vector<64x128xf32> -> vector<64x128xf32>
    %44 = tpu.concatenate %39, %43 in 1 : vector<64x128xf32>, vector<64x128xf32> -> vector<64x256xf32>
    %45 = arith.addf %44, %34 : vector<64x256xf32>
    %46 = vector.extract_strided_slice %45 {offsets = [0, 0], sizes = [16, 256], strides = [1, 1]} : vector<64x256xf32> to vector<16x256xf32>
    %47 = vector.extract_strided_slice %45 {offsets = [16, 0], sizes = [16, 256], strides = [1, 1]} : vector<64x256xf32> to vector<16x256xf32>
    %48 = vector.extract_strided_slice %45 {offsets = [32, 0], sizes = [16, 256], strides = [1, 1]} : vector<64x256xf32> to vector<16x256xf32>
    %49 = vector.extract_strided_slice %45 {offsets = [48, 0], sizes = [16, 256], strides = [1, 1]} : vector<64x256xf32> to vector<16x256xf32>
    %50 = math.absf %46 : vector<16x256xf32>
    %cst_18 = arith.constant 9.99999997E-7 : f32
    %51 = vector.broadcast %cst_18 : f32 to vector<16x256xf32>
    %52 = arith.addf %50, %51 : vector<16x256xf32>
    %53 = tpu.reciprocal %52 {approx = true} : vector<16x256xf32> -> vector<16x256xf32>
    %54 = arith.mulf %46, %53 : vector<16x256xf32>
    %55 = arith.mulf %47, %47 : vector<16x256xf32>
    %56 = arith.mulf %48, %48 : vector<16x256xf32>
    %57 = arith.addf %55, %56 : vector<16x256xf32>
    %58 = arith.mulf %49, %49 : vector<16x256xf32>
    %59 = arith.addf %57, %58 : vector<16x256xf32>
    %cst_19 = arith.constant 9.99999997E-7 : f32
    %60 = vector.broadcast %cst_19 : f32 to vector<16x256xf32>
    %61 = arith.addf %59, %60 : vector<16x256xf32>
    %62 = math.rsqrt %61 : vector<16x256xf32>
    %63 = arith.mulf %59, %62 : vector<16x256xf32>
    %64 = tpu.concatenate %50, %63 in 0 : vector<16x256xf32>, vector<16x256xf32> -> vector<32x256xf32>
    %65 = arith.truncf %64 : vector<32x256xf32> to vector<32x256xbf16>
    %cst_20 = arith.constant dense<0.000000e+00> : vector<32x256xf32>
    %66 = tpu.matmul %18, %65, %cst_20 {dimension_numbers = #tpu.dot_dimension_numbers<[1], [0], [0], [1], [0, 0, 1, 1], [], []>} : vector<32x32xbf16>, vector<32x256xbf16>, vector<32x256xf32> -> vector<32x256xf32>
    %67 = vector.broadcast %20 : vector<32x1xf32> to vector<32x256xf32>
    %68 = arith.addf %66, %67 : vector<32x256xf32>
    %cst_21 = arith.constant 0.000000e+00 : f32
    %69 = vector.broadcast %cst_21 : f32 to vector<32x256xf32>
    %70 = arith.maximumf %68, %69 : vector<32x256xf32>
    %71 = vector.extract_strided_slice %70 {offsets = [0, 0], sizes = [16, 256], strides = [1, 1]} : vector<32x256xf32> to vector<16x256xf32>
    %72 = arith.mulf %71, %54 : vector<16x256xf32>
    %73 = vector.extract_strided_slice %70 {offsets = [16, 0], sizes = [16, 256], strides = [1, 1]} : vector<32x256xf32> to vector<16x256xf32>
    %74 = arith.mulf %73, %62 : vector<16x256xf32>
    %75 = arith.mulf %74, %47 : vector<16x256xf32>
    %76 = arith.mulf %74, %48 : vector<16x256xf32>
    %77 = arith.mulf %74, %49 : vector<16x256xf32>
    %c1_22 = arith.constant 1 : index
    %c0_23 = arith.constant 0 : index
    %c0_24 = arith.constant 0 : index
    %78 = vector.load %arg3[%c1_22, %c0_23, %c0_24] : memref<2x96x128xbf16, #tpu.memory_space<vmem>>, vector<1x96x128xbf16>
    %79 = vector.shape_cast %78 : vector<1x96x128xbf16> to vector<96x128xbf16>
    %80 = vector.extract_strided_slice %79 {offsets = [0, 0], sizes = [64, 80], strides = [1, 1]} : vector<96x128xbf16> to vector<64x80xbf16>
    %81 = vector.extract_strided_slice %79 {offsets = [64, 0], sizes = [32, 32], strides = [1, 1]} : vector<96x128xbf16> to vector<32x32xbf16>
    %c0_25 = arith.constant 0 : index
    %c2 = arith.constant 2 : index
    %82 = vector.load %arg5[%c0_25, %c2] : memref<128x8xf32, #tpu.memory_space<vmem>>, vector<64x1xf32>
    %c0_26 = arith.constant 0 : index
    %c3 = arith.constant 3 : index
    %83 = vector.load %arg5[%c0_26, %c3] : memref<128x8xf32, #tpu.memory_space<vmem>>, vector<32x1xf32>
    %84 = arith.mulf %75, %75 : vector<16x256xf32>
    %85 = arith.mulf %76, %76 : vector<16x256xf32>
    %86 = arith.addf %84, %85 : vector<16x256xf32>
    %87 = arith.mulf %77, %77 : vector<16x256xf32>
    %88 = arith.addf %86, %87 : vector<16x256xf32>
    %cst_27 = arith.constant 9.99999997E-7 : f32
    %89 = vector.broadcast %cst_27 : f32 to vector<16x256xf32>
    %90 = arith.addf %88, %89 : vector<16x256xf32>
    %91 = math.rsqrt %90 : vector<16x256xf32>
    %92 = arith.mulf %88, %91 : vector<16x256xf32>
    %93 = tpu.concatenate %72, %92, %75, %76, %77 in 0 : vector<16x256xf32>, vector<16x256xf32>, vector<16x256xf32>, vector<16x256xf32>, vector<16x256xf32> -> vector<80x256xf32>
    %94 = arith.truncf %93 : vector<80x256xf32> to vector<80x256xbf16>
    %cst_28 = arith.constant dense<0.000000e+00> : vector<64x256xf32>
    %95 = tpu.matmul %80, %94, %cst_28 {dimension_numbers = #tpu.dot_dimension_numbers<[1], [0], [0], [1], [0, 0, 1, 1], [], []>} : vector<64x80xbf16>, vector<80x256xbf16>, vector<64x256xf32> -> vector<64x256xf32>
    %96 = vector.broadcast %82 : vector<64x1xf32> to vector<64x256xf32>
    %97 = arith.addf %95, %96 : vector<64x256xf32>
    %98 = arith.truncf %97 : vector<64x256xf32> to vector<64x256xbf16>
    %99 = vector.extract_strided_slice %98 {offsets = [0, 0], sizes = [64, 128], strides = [1, 1]} : vector<64x256xbf16> to vector<64x128xbf16>
    %c0_29 = arith.constant 0 : index
    %c0_30 = arith.constant 0 : index
    %c0_31 = arith.constant 0 : index
    %100 = vector.load %arg1[%c0_29, %c0_30, %c0_31] : memref<2x128x128xbf16, #tpu.memory_space<vmem>>, vector<1x128x128xbf16>
    %101 = vector.shape_cast %100 : vector<1x128x128xbf16> to vector<128x128xbf16>
    %cst_32 = arith.constant dense<0.000000e+00> : vector<64x128xf32>
    %102 = tpu.matmul %99, %101, %cst_32 {dimension_numbers = #tpu.dot_dimension_numbers<[1], [0], [0], [1], [0, 0, 1, 1], [], []>} : vector<64x128xbf16>, vector<128x128xbf16>, vector<64x128xf32> -> vector<64x128xf32>
    %103 = vector.extract_strided_slice %98 {offsets = [0, 128], sizes = [64, 128], strides = [1, 1]} : vector<64x256xbf16> to vector<64x128xbf16>
    %c1_33 = arith.constant 1 : index
    %c0_34 = arith.constant 0 : index
    %c0_35 = arith.constant 0 : index
    %104 = vector.load %arg1[%c1_33, %c0_34, %c0_35] : memref<2x128x128xbf16, #tpu.memory_space<vmem>>, vector<1x128x128xbf16>
    %105 = vector.shape_cast %104 : vector<1x128x128xbf16> to vector<128x128xbf16>
    %cst_36 = arith.constant dense<0.000000e+00> : vector<64x128xf32>
    %106 = tpu.matmul %103, %105, %cst_36 {dimension_numbers = #tpu.dot_dimension_numbers<[1], [0], [0], [1], [0, 0, 1, 1], [], []>} : vector<64x128xbf16>, vector<128x128xbf16>, vector<64x128xf32> -> vector<64x128xf32>
    %107 = tpu.concatenate %102, %106 in 1 : vector<64x128xf32>, vector<64x128xf32> -> vector<64x256xf32>
    %108 = arith.addf %107, %97 : vector<64x256xf32>
    %109 = vector.extract_strided_slice %108 {offsets = [0, 0], sizes = [16, 256], strides = [1, 1]} : vector<64x256xf32> to vector<16x256xf32>
    %110 = vector.extract_strided_slice %108 {offsets = [16, 0], sizes = [16, 256], strides = [1, 1]} : vector<64x256xf32> to vector<16x256xf32>
    %111 = vector.extract_strided_slice %108 {offsets = [32, 0], sizes = [16, 256], strides = [1, 1]} : vector<64x256xf32> to vector<16x256xf32>
    %112 = vector.extract_strided_slice %108 {offsets = [48, 0], sizes = [16, 256], strides = [1, 1]} : vector<64x256xf32> to vector<16x256xf32>
    %113 = math.absf %109 : vector<16x256xf32>
    %cst_37 = arith.constant 9.99999997E-7 : f32
    %114 = vector.broadcast %cst_37 : f32 to vector<16x256xf32>
    %115 = arith.addf %113, %114 : vector<16x256xf32>
    %116 = tpu.reciprocal %115 {approx = true} : vector<16x256xf32> -> vector<16x256xf32>
    %117 = arith.mulf %109, %116 : vector<16x256xf32>
    %118 = arith.mulf %110, %110 : vector<16x256xf32>
    %119 = arith.mulf %111, %111 : vector<16x256xf32>
    %120 = arith.addf %118, %119 : vector<16x256xf32>
    %121 = arith.mulf %112, %112 : vector<16x256xf32>
    %122 = arith.addf %120, %121 : vector<16x256xf32>
    %cst_38 = arith.constant 9.99999997E-7 : f32
    %123 = vector.broadcast %cst_38 : f32 to vector<16x256xf32>
    %124 = arith.addf %122, %123 : vector<16x256xf32>
    %125 = math.rsqrt %124 : vector<16x256xf32>
    %126 = arith.mulf %122, %125 : vector<16x256xf32>
    %127 = tpu.concatenate %113, %126 in 0 : vector<16x256xf32>, vector<16x256xf32> -> vector<32x256xf32>
    %128 = arith.truncf %127 : vector<32x256xf32> to vector<32x256xbf16>
    %cst_39 = arith.constant dense<0.000000e+00> : vector<32x256xf32>
    %129 = tpu.matmul %81, %128, %cst_39 {dimension_numbers = #tpu.dot_dimension_numbers<[1], [0], [0], [1], [0, 0, 1, 1], [], []>} : vector<32x32xbf16>, vector<32x256xbf16>, vector<32x256xf32> -> vector<32x256xf32>
    %130 = vector.broadcast %83 : vector<32x1xf32> to vector<32x256xf32>
    %131 = arith.addf %129, %130 : vector<32x256xf32>
    %cst_40 = arith.constant 0.000000e+00 : f32
    %132 = vector.broadcast %cst_40 : f32 to vector<32x256xf32>
    %133 = arith.maximumf %131, %132 : vector<32x256xf32>
    %134 = vector.extract_strided_slice %133 {offsets = [0, 0], sizes = [16, 256], strides = [1, 1]} : vector<32x256xf32> to vector<16x256xf32>
    %135 = arith.mulf %134, %117 : vector<16x256xf32>
    %136 = vector.extract_strided_slice %133 {offsets = [16, 0], sizes = [16, 256], strides = [1, 1]} : vector<32x256xf32> to vector<16x256xf32>
    %137 = arith.mulf %136, %125 : vector<16x256xf32>
    %138 = arith.mulf %137, %110 : vector<16x256xf32>
    %139 = arith.mulf %137, %111 : vector<16x256xf32>
    %140 = arith.mulf %137, %112 : vector<16x256xf32>
    %c0_41 = arith.constant 0 : index
    %c0_42 = arith.constant 0 : index
    %141 = vector.load %arg4[%c0_41, %c0_42] : memref<200x128xbf16, #tpu.memory_space<vmem>>, vector<200x128xbf16>
    %142 = vector.extract_strided_slice %141 {offsets = [0, 0], sizes = [64, 32], strides = [1, 1]} : vector<200x128xbf16> to vector<64x32xbf16>
    %143 = vector.extract_strided_slice %141 {offsets = [0, 32], sizes = [64, 16], strides = [1, 1]} : vector<200x128xbf16> to vector<64x16xbf16>
    %c0_43 = arith.constant 0 : index
    %c4 = arith.constant 4 : index
    %144 = vector.load %arg5[%c0_43, %c4] : memref<128x8xf32, #tpu.memory_space<vmem>>, vector<64x1xf32>
    %145 = arith.mulf %138, %138 : vector<16x256xf32>
    %146 = arith.mulf %139, %139 : vector<16x256xf32>
    %147 = arith.addf %145, %146 : vector<16x256xf32>
    %148 = arith.mulf %140, %140 : vector<16x256xf32>
    %149 = arith.addf %147, %148 : vector<16x256xf32>
    %cst_44 = arith.constant 9.99999997E-7 : f32
    %150 = vector.broadcast %cst_44 : f32 to vector<16x256xf32>
    %151 = arith.addf %149, %150 : vector<16x256xf32>
    %152 = math.rsqrt %151 : vector<16x256xf32>
    %153 = arith.mulf %149, %152 : vector<16x256xf32>
    %154 = tpu.concatenate %135, %153 in 0 : vector<16x256xf32>, vector<16x256xf32> -> vector<32x256xf32>
    %155 = arith.truncf %154 : vector<32x256xf32> to vector<32x256xbf16>
    %cst_45 = arith.constant dense<0.000000e+00> : vector<64x256xf32>
    %156 = tpu.matmul %142, %155, %cst_45 {dimension_numbers = #tpu.dot_dimension_numbers<[1], [0], [0], [1], [0, 0, 1, 1], [], []>} : vector<64x32xbf16>, vector<32x256xbf16>, vector<64x256xf32> -> vector<64x256xf32>
    %157 = arith.truncf %156 : vector<64x256xf32> to vector<64x256xbf16>
    %158 = vector.extract_strided_slice %157 {offsets = [0, 0], sizes = [64, 128], strides = [1, 1]} : vector<64x256xbf16> to vector<64x128xbf16>
    %c0_46 = arith.constant 0 : index
    %c0_47 = arith.constant 0 : index
    %c0_48 = arith.constant 0 : index
    %159 = vector.load %arg1[%c0_46, %c0_47, %c0_48] : memref<2x128x128xbf16, #tpu.memory_space<vmem>>, vector<1x128x128xbf16>
    %160 = vector.shape_cast %159 : vector<1x128x128xbf16> to vector<128x128xbf16>
    %cst_49 = arith.constant dense<0.000000e+00> : vector<64x128xf32>
    %161 = tpu.matmul %158, %160, %cst_49 {dimension_numbers = #tpu.dot_dimension_numbers<[1], [0], [0], [1], [0, 0, 1, 1], [], []>} : vector<64x128xbf16>, vector<128x128xbf16>, vector<64x128xf32> -> vector<64x128xf32>
    %162 = vector.extract_strided_slice %157 {offsets = [0, 128], sizes = [64, 128], strides = [1, 1]} : vector<64x256xbf16> to vector<64x128xbf16>
    %c1_50 = arith.constant 1 : index
    %c0_51 = arith.constant 0 : index
    %c0_52 = arith.constant 0 : index
    %163 = vector.load %arg1[%c1_50, %c0_51, %c0_52] : memref<2x128x128xbf16, #tpu.memory_space<vmem>>, vector<1x128x128xbf16>
    %164 = vector.shape_cast %163 : vector<1x128x128xbf16> to vector<128x128xbf16>
    %cst_53 = arith.constant dense<0.000000e+00> : vector<64x128xf32>
    %165 = tpu.matmul %162, %164, %cst_53 {dimension_numbers = #tpu.dot_dimension_numbers<[1], [0], [0], [1], [0, 0, 1, 1], [], []>} : vector<64x128xbf16>, vector<128x128xbf16>, vector<64x128xf32> -> vector<64x128xf32>
    %166 = tpu.concatenate %161, %165 in 1 : vector<64x128xf32>, vector<64x128xf32> -> vector<64x256xf32>
    %167 = arith.truncf %135 : vector<16x256xf32> to vector<16x256xbf16>
    %cst_54 = arith.constant dense<0.000000e+00> : vector<64x256xf32>
    %168 = tpu.matmul %143, %167, %cst_54 {dimension_numbers = #tpu.dot_dimension_numbers<[1], [0], [0], [1], [0, 0, 1, 1], [], []>} : vector<64x16xbf16>, vector<16x256xbf16>, vector<64x256xf32> -> vector<64x256xf32>
    %169 = arith.addf %166, %168 : vector<64x256xf32>
    %170 = vector.broadcast %144 : vector<64x1xf32> to vector<64x256xf32>
    %171 = arith.addf %169, %170 : vector<64x256xf32>
    %172 = vector.extract_strided_slice %141 {offsets = [64, 0], sizes = [128, 64], strides = [1, 1]} : vector<200x128xbf16> to vector<128x64xbf16>
    %173 = vector.extract_strided_slice %141 {offsets = [192, 0], sizes = [8, 128], strides = [1, 1]} : vector<200x128xbf16> to vector<8x128xbf16>
    %c0_55 = arith.constant 0 : index
    %c5 = arith.constant 5 : index
    %174 = vector.load %arg5[%c0_55, %c5] : memref<128x8xf32, #tpu.memory_space<vmem>>, vector<128x1xf32>
    %c0_56 = arith.constant 0 : index
    %c6 = arith.constant 6 : index
    %175 = vector.load %arg5[%c0_56, %c6] : memref<128x8xf32, #tpu.memory_space<vmem>>, vector<8x1xf32>
    %176 = arith.truncf %171 : vector<64x256xf32> to vector<64x256xbf16>
    %cst_57 = arith.constant dense<0.000000e+00> : vector<128x256xf32>
    %177 = tpu.matmul %172, %176, %cst_57 {dimension_numbers = #tpu.dot_dimension_numbers<[1], [0], [0], [1], [0, 0, 1, 1], [], []>} : vector<128x64xbf16>, vector<64x256xbf16>, vector<128x256xf32> -> vector<128x256xf32>
    %178 = vector.broadcast %174 : vector<128x1xf32> to vector<128x256xf32>
    %179 = arith.addf %177, %178 : vector<128x256xf32>
    %cst_58 = arith.constant 0.000000e+00 : f32
    %180 = vector.broadcast %cst_58 : f32 to vector<128x256xf32>
    %181 = arith.maximumf %179, %180 : vector<128x256xf32>
    %182 = arith.truncf %181 : vector<128x256xf32> to vector<128x256xbf16>
    %cst_59 = arith.constant dense<0.000000e+00> : vector<8x256xf32>
    %183 = tpu.matmul %173, %182, %cst_59 {dimension_numbers = #tpu.dot_dimension_numbers<[1], [0], [0], [1], [0, 0, 1, 1], [], []>} : vector<8x128xbf16>, vector<128x256xbf16>, vector<8x256xf32> -> vector<8x256xf32>
    %184 = vector.broadcast %175 : vector<8x1xf32> to vector<8x256xf32>
    %185 = arith.addf %183, %184 : vector<8x256xf32>
    %186 = vector.extract_strided_slice %185 {offsets = [0, 0], sizes = [8, 128], strides = [1, 1]} : vector<8x256xf32> to vector<8x128xf32>
    %c0_60 = arith.constant 0 : index
    %c0_61 = arith.constant 0 : index
    %c0_62 = arith.constant 0 : index
    %187 = vector.load %arg6[%c0_60, %c0_61, %c0_62] : memref<2x8x128xf32, #tpu.memory_space<vmem>>, vector<1x8x128xf32>
    %188 = vector.shape_cast %187 : vector<1x8x128xf32> to vector<8x128xf32>
    %189 = vector.shape_cast %186 : vector<8x128xf32> to vector<1x8x128xf32>
    tpu.vector_store %arg6[%c0_60, %c0_61, %c0_62], %189 {strides = array<i32>} : memref<2x8x128xf32, #tpu.memory_space<vmem>>, vector<1x8x128xf32>,
    %190 = vector.extract_strided_slice %185 {offsets = [0, 128], sizes = [8, 128], strides = [1, 1]} : vector<8x256xf32> to vector<8x128xf32>
    %c1_63 = arith.constant 1 : index
    %c0_64 = arith.constant 0 : index
    %c0_65 = arith.constant 0 : index
    %191 = vector.load %arg6[%c1_63, %c0_64, %c0_65] : memref<2x8x128xf32, #tpu.memory_space<vmem>>, vector<1x8x128xf32>
    %192 = vector.shape_cast %191 : vector<1x8x128xf32> to vector<8x128xf32>
    %193 = vector.shape_cast %190 : vector<8x128xf32> to vector<1x8x128xf32>
    tpu.vector_store %arg6[%c1_63, %c0_64, %c0_65], %193 {strides = array<i32>} : memref<2x8x128xf32, #tpu.memory_space<vmem>>, vector<1x8x128xf32>,
    return
  }
  func.func @transform_0(%arg0: i32) -> (i32, i32, i32) {
    %c0_i32 = arith.constant 0 : i32
    %c0_i32_0 = arith.constant 0 : i32
    %c0_i32_1 = arith.constant 0 : i32
    return %arg0, %c0_i32, %c0_i32_0 : i32, i32, i32
  }
  func.func @transform_1(%arg0: i32) -> (i32, i32, i32) {
    %c0_i32 = arith.constant 0 : i32
    %c0_i32_0 = arith.constant 0 : i32
    %c0_i32_1 = arith.constant 0 : i32
    return %arg0, %c0_i32, %c0_i32_0 : i32, i32, i32
  }
  func.func @transform_2(%arg0: i32) -> (i32, i32, i32) {
    %c0_i32 = arith.constant 0 : i32
    %c0_i32_0 = arith.constant 0 : i32
    %c0_i32_1 = arith.constant 0 : i32
    %c0_i32_2 = arith.constant 0 : i32
    return %c0_i32, %c0_i32_0, %c0_i32_1 : i32, i32, i32
  }
  func.func @transform_3(%arg0: i32) -> (i32, i32) {
    %c0_i32 = arith.constant 0 : i32
    %c0_i32_0 = arith.constant 0 : i32
    %c0_i32_1 = arith.constant 0 : i32
    return %c0_i32, %c0_i32_0 : i32, i32
  }
  func.func @transform_4(%arg0: i32) -> (i32, i32) {
    %c0_i32 = arith.constant 0 : i32
    %c0_i32_0 = arith.constant 0 : i32
    %c0_i32_1 = arith.constant 0 : i32
    return %c0_i32, %c0_i32_0 : i32, i32
  }
  func.func @transform_5(%arg0: i32) -> (i32, i32, i32) {
    %c0_i32 = arith.constant 0 : i32
    %c0_i32_0 = arith.constant 0 : i32
    %c0_i32_1 = arith.constant 0 : i32
    return %arg0, %c0_i32, %c0_i32_0 : i32, i32, i32
  }
}

</mosaic_0001>

<llo_original>
// kernel: tpu_custom_call.1
$region0: #{tpu_custom_call.1}
  #allocation0 [shape = 'u32[]', space=smem, size = 0x4, offset = 0x4, fixed_abs, tag = 'smem constant byte address 0x4 - core index']
  #allocation1 [shape = 'u32[144,128]{1,0:T(1,128)}', space=vmem, size = 0x12000, scoped, tag = 'internal scratch']
  %s0 = inlined_call_operand.hbm [shape: bf16[16,128,128], index: 0, kind: input, shape index: {}]
  %s1 = inlined_call_operand.vmem [shape: f32[16,8,128], index: 1, kind: input, shape index: {}]
  %s2 = inlined_call_operand.hbm [shape: bf16[2,96,128], index: 2, kind: input, shape index: {}]
  %s3 = inlined_call_operand.hbm [shape: bf16[200,128], index: 3, kind: input, shape index: {}]
  %s4 = inlined_call_operand.vmem [shape: f32[128,8], index: 4, kind: input, shape index: {}]
  %s5 = inlined_call_operand.hbm [shape: f32[16,8,128], index: 5, kind: output, shape index: {}]
  %s6 = sld [smem:[#allocation0]]
  $region65: #{tpu_custom_call.1} parent=0
    _
  %s8 = ssub.s32 1, %s6
  %s9 = scalar_select 0, %s8, %s6
  $region1: #{tpu_custom_call.1} parent=0
    #allocation2 [shape = 'u8[131072]{0}', space=vmem, size = 0x20000, scoped, tag = 'input window, operand 0']
    #allocation3 [shape = 's32[2]{0}', space=sflag, size = 0x8, scoped, tag = 'scoped memory for tpu_custom_call.1']
    #allocation4 [shape = 's32[2]{0}', space=sflag, size = 0x8, scoped, tag = 'scoped memory for tpu_custom_call.1']
    #allocation5 [shape = 'u8[49152]{0}', space=vmem, size = 0xc000, scoped, tag = 'input window, operand 2, single buffered']
    #allocation6 [shape = 's32[1]{0}', space=sflag, size = 0x4, scoped, tag = 'scoped memory for tpu_custom_call.1']
    #allocation7 [shape = 'u8[51200]{0}', space=vmem, size = 0xc800, scoped, tag = 'input window, operand 3, single buffered']
    #allocation8 [shape = 'u8[16384]{0}', space=vmem, size = 0x4000, scoped, tag = 'output window, operand 0']
    %10 = vsyncpa [#allocation3], 0
    %s11 = scalar_lea.sflag [#allocation3], 1
    %12 = vsyncpa %s11, 0
    %13 = vsyncpa [#allocation6], 0
    %14 = vsyncpa [#allocation4], 0
    %s15 = scalar_lea.sflag [#allocation4], 1
    %16 = vsyncpa %s15, 0
    loop: start=0, step=1, limit=10
    $region2: #{tpu_custom_call.1} parent=1 // loop_pre_header
      _
    $region3: #{tpu_custom_call.1} parent=1 // loop_header
      %s18 = sphi 0, %s22
      %p19 = scmp.ge.s32.totalorder %s18, 10
      %s28 = sphi 0, %s30
      %s31 = sphi 0, %s28
      %s32 = sphi 0, %s31
      %s48 = sphi 0, %s32
      %s54 = sphi 0, %s56
      %s57 = sphi 0, %s54
      %s58 = sphi 0, %s57
      %s74 = sphi 0, %s58
      %s78 = sphi 0, %s78
      %s80 = sphi 0, %s78
      %s81 = sphi 0, %s80
      %s95 = sphi 0, %s81
      %s99 = sphi 0, %s99
      %s101 = sphi 0, %s99
      %s102 = sphi 0, %s101
      %s116 = sphi 0, %s102
      %s120 = sphi 0, %s120
      %s122 = sphi 0, %s120
      %s123 = sphi 0, %s122
      %s137 = sphi 0, %s123
      %s143 = sphi 0, %s145
      %s146 = sphi 0, %s143
      %s147 = sphi 0, %s146
      %s163 = sphi 0, %s147
    $region4: #{tpu_custom_call.1} parent=1 // loop_header_branch
      %21 = sbr.rel (%p19) target = $region8
    $region5: #{tpu_custom_call.1} parent=1 // loop_body
      %s23 = ssub.s32 %s18, 1
      %s24 = ssub.s32 %s18, 2
      %s25 = sadd.s32 %s18, 1
      %s26 = ssub.s32 %s18, %s25
      %p27 = scmp.eq.s32.totalorder %s26, 0
      %s29 = sadd.s32 %s28, 1
      %s30 = scalar_select %p27, %s28, %s29
      %p33 = pneg %p27
      %p34 = scmp.eq.s32.totalorder %s18, 7
      %p35 = por %p33, %p34
      %p36 = scmp.ne.s32.totalorder %s28, %s31
      %p37 = scmp.eq.s32.totalorder %s18, 0
      %p38 = por %p36, %p37
      %p39 = scmp.ne.s32.totalorder %s28, %s31
      %p40 = scmp.eq.s32.totalorder %s23, 7
      %p41 = por %p39, %p40
      %p42 = scmp.ne.s32.totalorder %s31, %s32
      %p43 = scmp.eq.s32.totalorder %s23, 0
      %p44 = por %p42, %p43
      %p45 = scmp.ne.s32.totalorder %s31, %s32
      %p46 = scmp.eq.s32.totalorder %s24, 7
      %p47 = por %p45, %p46
      %p49 = scmp.ne.s32.totalorder %s32, %s48
      %p50 = scmp.eq.s32.totalorder %s24, 0
      %p51 = por %p49, %p50
      %s52 = ssub.s32 %s18, %s25
      %p53 = scmp.eq.s32.totalorder %s52, 0
      %s55 = sadd.s32 %s54, 1
      %s56 = scalar_select %p53, %s54, %s55
      %p59 = pneg %p53
      %p60 = scmp.eq.s32.totalorder %s18, 7
      %p61 = por %p59, %p60
      %p62 = scmp.ne.s32.totalorder %s54, %s57
      %p63 = scmp.eq.s32.totalorder %s18, 0
      %p64 = por %p62, %p63
      %p65 = scmp.ne.s32.totalorder %s54, %s57
      %p66 = scmp.eq.s32.totalorder %s23, 7
      %p67 = por %p65, %p66
      %p68 = scmp.ne.s32.totalorder %s57, %s58
      %p69 = scmp.eq.s32.totalorder %s23, 0
      %p70 = por %p68, %p69
      %p71 = scmp.ne.s32.totalorder %s57, %s58
      %p72 = scmp.eq.s32.totalorder %s24, 7
      %p73 = por %p71, %p72
      %p75 = scmp.ne.s32.totalorder %s58, %s74
      %p76 = scmp.eq.s32.totalorder %s24, 0
      %p77 = por %p75, %p76
      %s79 = sadd.s32 %s78, 1
      %p82 = scmp.eq.s32.totalorder %s18, 7
      %p83 = scmp.ne.s32.totalorder %s78, %s80
      %p84 = scmp.eq.s32.totalorder %s18, 0
      %p85 = por %p83, %p84
      %p86 = scmp.ne.s32.totalorder %s78, %s80
      %p87 = scmp.eq.s32.totalorder %s23, 7
      %p88 = por %p86, %p87
      %p89 = scmp.ne.s32.totalorder %s80, %s81
      %p90 = scmp.eq.s32.totalorder %s23, 0
      %p91 = por %p89, %p90
      %p92 = scmp.ne.s32.totalorder %s80, %s81
      %p93 = scmp.eq.s32.totalorder %s24, 7
      %p94 = por %p92, %p93
      %p96 = scmp.ne.s32.totalorder %s81, %s95
      %p97 = scmp.eq.s32.totalorder %s24, 0
      %p98 = por %p96, %p97
      %s100 = sadd.s32 %s99, 1
      %p103 = scmp.eq.s32.totalorder %s18, 7
      %p104 = scmp.ne.s32.totalorder %s99, %s101
      %p105 = scmp.eq.s32.totalorder %s18, 0
      %p106 = por %p104, %p105
      %p107 = scmp.ne.s32.totalorder %s99, %s101
      %p108 = scmp.eq.s32.totalorder %s23, 7
      %p109 = por %p107, %p108
      %p110 = scmp.ne.s32.totalorder %s101, %s102
      %p111 = scmp.eq.s32.totalorder %s23, 0
      %p112 = por %p110, %p111
      %p113 = scmp.ne.s32.totalorder %s101, %s102
      %p114 = scmp.eq.s32.totalorder %s24, 7
      %p115 = por %p113, %p114
      %p117 = scmp.ne.s32.totalorder %s102, %s116
      %p118 = scmp.eq.s32.totalorder %s24, 0
      %p119 = por %p117, %p118
      %s121 = sadd.s32 %s120, 1
      %p124 = scmp.eq.s32.totalorder %s18, 7
      %p125 = scmp.ne.s32.totalorder %s120, %s122
      %p126 = scmp.eq.s32.totalorder %s18, 0
      %p127 = por %p125, %p126
      %p128 = scmp.ne.s32.totalorder %s120, %s122
      %p129 = scmp.eq.s32.totalorder %s23, 7
      %p130 = por %p128, %p129
      %p131 = scmp.ne.s32.totalorder %s122, %s123
      %p132 = scmp.eq.s32.totalorder %s23, 0
      %p133 = por %p131, %p132
      %p134 = scmp.ne.s32.totalorder %s122, %s123
      %p135 = scmp.eq.s32.totalorder %s24, 7
      %p136 = por %p134, %p135
      %p138 = scmp.ne.s32.totalorder %s123, %s137
      %p139 = scmp.eq.s32.totalorder %s24, 0
      %p140 = por %p138, %p139
      %s141 = ssub.s32 %s18, %s25
      %p142 = scmp.eq.s32.totalorder %s141, 0
      %s144 = sadd.s32 %s143, 1
      %s145 = scalar_select %p142, %s143, %s144
      %p148 = pneg %p142
      %p149 = scmp.eq.s32.totalorder %s18, 7
      %p150 = por %p148, %p149
      %p151 = scmp.ne.s32.totalorder %s143, %s146
      %p152 = scmp.eq.s32.totalorder %s18, 0
      %p153 = por %p151, %p152
      %p154 = scmp.ne.s32.totalorder %s143, %s146
      %p155 = scmp.eq.s32.totalorder %s23, 7
      %p156 = por %p154, %p155
      %p157 = scmp.ne.s32.totalorder %s146, %s147
      %p158 = scmp.eq.s32.totalorder %s23, 0
      %p159 = por %p157, %p158
      %p160 = scmp.ne.s32.totalorder %s146, %s147
      %p161 = scmp.eq.s32.totalorder %s24, 7
      %p162 = por %p160, %p161
      %p164 = scmp.ne.s32.totalorder %s147, %s163
      %p165 = scmp.eq.s32.totalorder %s24, 0
      %p166 = por %p164, %p165
      %p167 = scmp.le.s32.totalorder 1, %s18
      %p168 = scmp.lt.s32.totalorder %s18, 9
      %p169 = pnand %p167, %p168
      %p170 = pneg %p169
      // Predicated region
      $region9: #{tpu_custom_call.1} parent=5 // pred_check
        _
      $region10: #{tpu_custom_call.1} parent=5 // pred_check_branch
        %172 = sbr.rel (%p169) target = $region12
      $region11: #{tpu_custom_call.1} parent=5 // pred_region
        %s173 = ssub.s32 %s18, 1
        // Predicated region
        $region13: #{tpu_custom_call.1} parent=11 // pred_check
          %p174 = pneg %p91
        $region14: #{tpu_custom_call.1} parent=11 // pred_check_branch
          %176 = sbr.rel (%p174) target = $region16
        $region15: #{tpu_custom_call.1} parent=11 // pred_region
          %s178 = ssub.s32 1536, 1536
          %179 = vsyncadd [#allocation6], %s178
          %s180 = sshll.u32 [#allocation5], 4
          %s181 = int_to_ptr.vmem [resolvable:$true] %s180
          %186 = dma.hbm_to_vmem [thread:$0]  %s2, 1536, %s181, [#allocation6], 64, 64, 4
        $region16: #{tpu_custom_call.1} parent=11 // pred_fallthru
          _
        // Predicated region
        $region17: #{tpu_custom_call.1} parent=11 // pred_check
          %p187 = pneg %p112
        $region18: #{tpu_custom_call.1} parent=11 // pred_check_branch
          %189 = sbr.rel (%p187) target = $region20
        $region19: #{tpu_custom_call.1} parent=11 // pred_region
          %s191 = ssub.s32 1600, 1600
          %192 = vsyncadd [#allocation6], %s191
          %s193 = sshll.u32 [#allocation7], 4
          %s194 = int_to_ptr.vmem [resolvable:$true] %s193
          %199 = dma.hbm_to_vmem [thread:$0]  %s3, 1600, %s194, [#allocation6], 64, 64, 4
        $region20: #{tpu_custom_call.1} parent=11 // pred_fallthru
          _
        // Predicated region
        $region21: #{tpu_custom_call.1} parent=11 // pred_check
          %p200 = pneg %p133
        $region22: #{tpu_custom_call.1} parent=11 // pred_check_branch
          %202 = sbr.rel (%p200) target = $region24
        $region23: #{tpu_custom_call.1} parent=11 // pred_region
          _
        $region24: #{tpu_custom_call.1} parent=11 // pred_fallthru
          _
      $region12: #{tpu_custom_call.1} parent=5 // pred_fallthru
        _
      %p203 = scmp.lt.s32.totalorder %s18, 8
      // Predicated region
      $region25: #{tpu_custom_call.1} parent=5 // pred_check
        %p204 = pneg %p203
      $region26: #{tpu_custom_call.1} parent=5 // pred_check_branch
        %206 = sbr.rel (%p204) target = $region28
      $region27: #{tpu_custom_call.1} parent=5 // pred_region
        // Predicated region
        $region29: #{tpu_custom_call.1} parent=27 // pred_check
          %p207 = pneg %p38
        $region30: #{tpu_custom_call.1} parent=27 // pred_check_branch
          %209 = sbr.rel (%p207) target = $region32
        $region31: #{tpu_custom_call.1} parent=27 // pred_region
          %s210 = sand.u32 %s28, 1
          %s211 = scalar_lea.sflag [#allocation3], %s210
          %s212 = sand.u32 %s28, 1
          %s213 = smul.addr %s212, 128
          %s214 = scalar_lea.vmem [#allocation2], %s213
          %s215 = smul.u32 2, %s18
          %s217 = ssub.s32 2048, 2048
          %218 = vsyncadd %s211, %s217
          %s219 = smul.addr %s215, 16
          %s220 = smul.addr %s219, 64
          %s221 = scalar_lea.hbm %s0, %s220
          %s222 = sshll.u32 %s214, 4
          %s223 = int_to_ptr.vmem [resolvable:$true] %s222
          %228 = dma.hbm_to_vmem [thread:$0]  %s221, 2048, %s223, %s211, 64, 64, 4
        $region32: #{tpu_custom_call.1} parent=27 // pred_fallthru
          _
        // Predicated region
        $region33: #{tpu_custom_call.1} parent=27 // pred_check
          %p229 = pneg %p64
        $region34: #{tpu_custom_call.1} parent=27 // pred_check_branch
          %231 = sbr.rel (%p229) target = $region36
        $region35: #{tpu_custom_call.1} parent=27 // pred_region
          %s232 = smul.u32 2, %s18
          %p233 = scmp.lt.s32.totalorder %s232, 15
          %s234 = scalar_select %p233, %s232, 15
          %s235 = smul.addr %s234, 8
          %s236 = scalar_lea.vmem %s1, %s235
          %s237 = smul.u32 2, %s18
        $region36: #{tpu_custom_call.1} parent=27 // pred_fallthru
          _
      $region28: #{tpu_custom_call.1} parent=5 // pred_fallthru
        _
      %p238 = scmp.le.s32.totalorder 1, %s18
      %p239 = scmp.lt.s32.totalorder %s18, 9
      %p240 = pnand %p238, %p239
      %p241 = pneg %p240
      // Predicated region
      $region37: #{tpu_custom_call.1} parent=5 // pred_check
        _
      $region38: #{tpu_custom_call.1} parent=5 // pred_check_branch
        %243 = sbr.rel (%p240) target = $region40
      $region39: #{tpu_custom_call.1} parent=5 // pred_region
        %s244 = ssub.s32 %s18, 1
        %s245 = sand.u32 %s31, 1
        %s246 = scalar_lea.sflag [#allocation3], %s245
        %s247 = sand.u32 %s31, 1
        %s248 = smul.addr %s247, 128
        %s249 = scalar_lea.vmem [#allocation2], %s248
        // Predicated region
        $region41: #{tpu_custom_call.1} parent=39 // pred_check
          %p250 = pneg %p44
        $region42: #{tpu_custom_call.1} parent=39 // pred_check_branch
          %252 = sbr.rel (%p250) target = $region44
        $region43: #{tpu_custom_call.1} parent=39 // pred_region
          %253 = dma.done %s246, 2048
        $region44: #{tpu_custom_call.1} parent=39 // pred_fallthru
          _
        // Predicated region
        $region45: #{tpu_custom_call.1} parent=39 // pred_check
          %p254 = pneg %p91
        $region46: #{tpu_custom_call.1} parent=39 // pred_check_branch
          %256 = sbr.rel (%p254) target = $region48
        $region47: #{tpu_custom_call.1} parent=39 // pred_region
          %257 = dma.done [#allocation6], 1536
        $region48: #{tpu_custom_call.1} parent=39 // pred_fallthru
          _
        // Predicated region
        $region49: #{tpu_custom_call.1} parent=39 // pred_check
          %p258 = pneg %p112
        $region50: #{tpu_custom_call.1} parent=39 // pred_check_branch
          %260 = sbr.rel (%p258) target = $region52
        $region51: #{tpu_custom_call.1} parent=39 // pred_region
          %261 = dma.done [#allocation6], 1600
        $region52: #{tpu_custom_call.1} parent=39 // pred_fallthru
          _
        %s262 = sand.u32 %s31, 1
        %s263 = scalar_lea.sflag [#allocation3], %s262
        %s264 = sand.u32 %s31, 1
        %s265 = smul.addr %s264, 128
        %s266 = scalar_lea.vmem [#allocation2], %s265
        %p267 = pneg %p44
        %p268 = pneg %p41
        %s269 = smul.u32 2, %s23
        %p270 = scmp.lt.s32.totalorder %s269, 15
        %s271 = scalar_select %p270, %s269, 15
        %s272 = smul.addr %s271, 8
        %s273 = scalar_lea.vmem %s1, %s272
        %p274 = pneg %p70
        %p275 = pneg %p67
        %p276 = pneg %p91
        %p277 = pneg %p88
        %p278 = pneg %p112
        %p279 = pneg %p109
        %p280 = pneg %p133
        %p281 = pneg %p130
        %p282 = pneg %p159
        %p283 = pneg %p156
        %s284 = sand.u32 %s146, 1
        %s285 = scalar_lea.sflag [#allocation4], %s284
        %s286 = sand.u32 %s146, 1
        %s287 = smul.addr %s286, 16
        %s288 = scalar_lea.vmem [#allocation8], %s287
        %s289 = smul.u32 2, %s23
        %s290 = smul.u32 2, %s23
        %p291 = scmp.lt.s32.totalorder %s290, 15
        %s292 = scalar_select %p291, %s290, 15
        %s293 = smul.addr %s292, 8
        %s294 = scalar_lea.vmem %s1, %s293
        %s295 = smul.u32 2, %s23
        %s296 = smul.u32 2, %s23
        %v298 = vld [vmem:[%s294] sm:$0xff]
        %v299 = vld [vmem:[%s294 + $0x8] sm:$0xff]
        %vm300 = vcmask 1040384
        %v301 = vsel %vm300, %v298, 0.0
        %v302 = vsel %vm300, %v299, 0.0
        %v305 = vrot.slane %v298, 1
        %v306 = vrot.slane %v299, 1
        %v309 = vsel %vm300, %v305, 0.0
        %v310 = vsel %vm300, %v306, 0.0
        %v311 = vrot.slane %v298, 2
        %v312 = vrot.slane %v299, 2
        %v315 = vsel %vm300, %v311, 0.0
        %v316 = vsel %vm300, %v312, 0.0
        %v317 = vrot.slane %v298, 3
        %v318 = vrot.slane %v299, 3
        %v321 = vsel %vm300, %v317, 0.0
        %v322 = vsel %vm300, %v318, 0.0
        %v323 = vld [vmem:[#allocation5] sm:$0xf]
        %v324 = vld [vmem:[#allocation5 + $0x4] sm:$0xf]
        %v325 = vld [vmem:[#allocation5 + $0x8] sm:$0xf]
        %v326 = vld [vmem:[#allocation5 + $0xc] sm:$0xf]
        %v327 = vld [vmem:[#allocation5 + $0x10] sm:$0xf]
        %v328 = vld [vmem:[#allocation5 + $0x14] sm:$0xf]
        %v329 = vld [vmem:[#allocation5 + $0x18] sm:$0xf]
        %v330 = vld [vmem:[#allocation5 + $0x1c] sm:$0xf]
        %v331 = vld [vmem:[#allocation5 + $0x20] sm:$0xf]
        %v332 = vld [vmem:[#allocation5 + $0x24] sm:$0xf]
        %v333 = vld [vmem:[#allocation5 + $0x28] sm:$0xf]
        %v334 = vld [vmem:[#allocation5 + $0x2c] sm:$0xf]
        %v335 = vld [vmem:[%s4] sm:$0xff]
        %v336 = vld [vmem:[%s4 + $0x8] sm:$0xff]
        %v337 = vld [vmem:[%s4 + $0x10] sm:$0xff]
        %v338 = vld [vmem:[%s4 + $0x18] sm:$0xff]
        %v339 = vld [vmem:[%s4 + $0x20] sm:$0xff]
        %v340 = vld [vmem:[%s4 + $0x28] sm:$0xff]
        %v341 = vld [vmem:[%s4 + $0x30] sm:$0xff]
        %v342 = vld [vmem:[%s4 + $0x38] sm:$0xff]
        %v343 = vmul.f32 %v309, %v309
        %v344 = vmul.f32 %v310, %v310
        %v345 = vmul.f32 %v315, %v315
        %v346 = vmul.f32 %v316, %v316
        %v347 = vadd.f32 %v343, %v345
        %v348 = vadd.f32 %v344, %v346
        %v349 = vmul.f32 %v321, %v321
        %v350 = vmul.f32 %v322, %v322
        %v351 = vadd.f32 %v347, %v349
        %v352 = vadd.f32 %v348, %v350
        %v353 = vadd.f32 %v351, 1e-06
        %v354 = vadd.f32 %v352, 1e-06
        %v355 = vrsqrt.pop %v353
        %v356 = vrsqrt.pop %v354
        %v357 = vmul.f32 %v351, %v355
        %v358 = vmul.f32 %v352, %v356
        %v359 = vpack.c.bf16 0.0, %v301
        %v360 = vpack.c.bf16 0.0, %v302
        %v361 = vpack.c.bf16 0.0, %v357
        %v362 = vpack.c.bf16 0.0, %v358
        %v363 = vpack.c.bf16 0.0, %v309
        %v364 = vpack.c.bf16 0.0, %v310
        %v365 = vpack.c.bf16 0.0, %v315
        %v366 = vpack.c.bf16 0.0, %v316
        %v367 = vpack.c.bf16 0.0, %v321
        %v368 = vpack.c.bf16 0.0, %v322
        %370 = vset.pattern.permute.xlu0 0
        %371 = vperm.xlu0 %370, %v335
        %v372 = vpop.permute.xlu0 %371
        %375 = vset.pattern.permute.xlu0 0
        %376 = vperm.xlu0 %375, %v336
        %v377 = vpop.permute.xlu0 %376
        %380 = vset.pattern.permute.xlu0 0
        %381 = vperm.xlu0 %380, %v337
        %v382 = vpop.permute.xlu0 %381
        %385 = vset.pattern.permute.xlu0 0
        %386 = vperm.xlu0 %385, %v338
        %v387 = vpop.permute.xlu0 %386
        %390 = vset.pattern.permute.xlu0 0
        %391 = vperm.xlu0 %390, %v339
        %v392 = vpop.permute.xlu0 %391
        %395 = vset.pattern.permute.xlu0 0
        %396 = vperm.xlu0 %395, %v340
        %v397 = vpop.permute.xlu0 %396
        %400 = vset.pattern.permute.xlu0 0
        %401 = vperm.xlu0 %400, %v341
        %v402 = vpop.permute.xlu0 %401
        %405 = vset.pattern.permute.xlu0 0
        %406 = vperm.xlu0 %405, %v342
        %v407 = vpop.permute.xlu0 %406
        %v417 = vunpack.c.l.b16 %v323
        %v418 = vunpack.c.l.b16 %v324
        %v419 = vunpack.c.l.b16 %v325
        %v420 = vunpack.c.l.b16 %v326
        %v421 = vunpack.c.l.b16 %v327
        %v422 = vunpack.c.l.b16 %v328
        %v423 = vunpack.c.l.b16 %v329
        %v424 = vunpack.c.l.b16 %v330
        %v425 = vpack.c.b16 %v418, %v417
        %v426 = vpack.c.b16 %v420, %v419
        %v427 = vpack.c.b16 %v422, %v421
        %v428 = vpack.c.b16 %v424, %v423
        %vm429 = vcmask 654336
        %v431 = vsel %vm429, %v425, 0
        %v434 = vsel %vm429, %v426, 0
        %v437 = vsel %vm429, %v427, 0
        %v440 = vsel %vm429, %v428, 0
        %442 = vmatprep.subr.bf16.mxu0 %v360
        %443 = vmatpush1.bf16.msra.mxu0 %v359
        %444 = vmatprep.subr.bf16.mxu0 %v362
        %445 = vmatpush1.bf16.msra.mxu0 %v361
        %446 = vmatprep.subr.bf16.mxu0 %v364
        %447 = vmatpush1.bf16.msra.mxu0 %v363
        %448 = vmatprep.subr.bf16.mxu0 %v366
        %449 = vmatpush1.bf16.msra.mxu0 %v365
        %450 = vmatprep.subr.bf16.mxu0 %v368
        %451 = vmatpush1.bf16.msra.mxu0 %v367
        %452 = vmatprep.subr.bf16.mxu0 0
        %453 = vmatpush1.bf16.msra.mxu0 0
        %454 = vmatprep.subr.bf16.mxu0 0
        %455 = vmatpush1.bf16.msra.mxu0 0
        %456 = vmatprep.subr.bf16.mxu0 0
        %457 = vmatpush1.bf16.msra.mxu0 0
        %458 = vmatprep.subr.bf16.mxu0 0
        %459 = vmatpush1.bf16.msra.mxu0 0
        %460 = vmatprep.subr.bf16.mxu0 0
        %461 = vmatpush1.bf16.msra.mxu0 0
        %462 = vmatprep.subr.bf16.mxu0 0
        %463 = vmatpush1.bf16.msra.mxu0 0
        %464 = vmatprep.subr.bf16.mxu0 0
        %465 = vmatpush1.bf16.msra.mxu0 0
        %466 = vmatprep.subr.bf16.mxu0 0
        %467 = vmatpush1.bf16.msra.mxu0 0
        %468 = vmatprep.subr.bf16.mxu0 0
        %469 = vmatpush1.bf16.msra.mxu0 0
        %470 = vmatprep.subr.bf16.mxu0 0
        %471 = vmatpush1.bf16.msra.mxu0 0
        %472 = vmatprep.subr.bf16.mxu0 0
        %473 = vmatpush1.bf16.msra.mxu0 0
        %474 = vmatprep.mubr.bf16.mxu0 0
        %475 = vmatmul.mubr.bf16.gmra.mrb[0].mxu0 %v431
        %v476 = vpop.f32.mrb[0].mxu0
        %v477 = vadd.f32 %v372, %v476
        %v478 = vpop.f32.mrb[0].mxu0
        %v479 = vadd.f32 %v372, %v478
        %v480 = vpop.f32.mrb[0].mxu0
        %v481 = vadd.f32 %v377, %v480
        %v482 = vpop.f32.mrb[0].mxu0
        %v483 = vadd.f32 %v377, %v482
        %484 = vmatprep.mubr.bf16.mxu0 0
        %485 = vmatmul.mubr.bf16.gmra.mrb[0].mxu0 %v434
        %v486 = vpop.f32.mrb[0].mxu0
        %v487 = vadd.f32 %v382, %v486
        %v488 = vpop.f32.mrb[0].mxu0
        %v489 = vadd.f32 %v382, %v488
        %v490 = vpop.f32.mrb[0].mxu0
        %v491 = vadd.f32 %v387, %v490
        %v492 = vpop.f32.mrb[0].mxu0
        %v493 = vadd.f32 %v387, %v492
        %494 = vmatprep.mubr.bf16.mxu0 0
        %495 = vmatmul.mubr.bf16.gmra.mrb[0].mxu0 %v437
        %v496 = vpop.f32.mrb[0].mxu0
        %v497 = vadd.f32 %v392, %v496
        %v498 = vpop.f32.mrb[0].mxu0
        %v499 = vadd.f32 %v392, %v498
        %v500 = vpop.f32.mrb[0].mxu0
        %v501 = vadd.f32 %v397, %v500
        %v502 = vpop.f32.mrb[0].mxu0
        %v503 = vadd.f32 %v397, %v502
        %504 = vmatprep.mubr.bf16.mxu0 0
        %505 = vmatmul.mubr.bf16.gmra.mrb[0].mxu0 %v440
        %v506 = vpop.f32.mrb[0].mxu0
        %v507 = vadd.f32 %v402, %v506
        %v508 = vpop.f32.mrb[0].mxu0
        %v509 = vadd.f32 %v402, %v508
        %v510 = vpop.f32.mrb[0].mxu0
        %v511 = vadd.f32 %v407, %v510
        %v512 = vpop.f32.mrb[0].mxu0
        %v513 = vadd.f32 %v407, %v512
        %514 = vdwg.mxu0
        %v515 = vpack.c.bf16 %v481, %v477
        %v516 = vpack.c.bf16 %v483, %v479
        %v517 = vpack.c.bf16 %v491, %v487
        %v518 = vpack.c.bf16 %v493, %v489
        %v519 = vpack.c.bf16 %v501, %v497
        %v520 = vpack.c.bf16 %v503, %v499
        %v521 = vpack.c.bf16 %v511, %v507
        %v522 = vpack.c.bf16 %v513, %v509
        %v523 = vld [vmem:[%s249] sm:$0xf]
        %v524 = vld [vmem:[%s249 + $0x4] sm:$0xf]
        %v525 = vld [vmem:[%s249 + $0x8] sm:$0xf]
        %v526 = vld [vmem:[%s249 + $0xc] sm:$0xf]
        %v527 = vld [vmem:[%s249 + $0x10] sm:$0xf]
        %v528 = vld [vmem:[%s249 + $0x14] sm:$0xf]
        %v529 = vld [vmem:[%s249 + $0x18] sm:$0xf]
        %v530 = vld [vmem:[%s249 + $0x1c] sm:$0xf]
        %v531 = vld [vmem:[%s249 + $0x20] sm:$0xf]
        %v532 = vld [vmem:[%s249 + $0x24] sm:$0xf]
        %v533 = vld [vmem:[%s249 + $0x28] sm:$0xf]
        %v534 = vld [vmem:[%s249 + $0x2c] sm:$0xf]
        %v535 = vld [vmem:[%s249 + $0x30] sm:$0xf]
        %v536 = vld [vmem:[%s249 + $0x34] sm:$0xf]
        %v537 = vld [vmem:[%s249 + $0x38] sm:$0xf]
        %v538 = vld [vmem:[%s249 + $0x3c] sm:$0xf]
        %v555 = vunpack.c.l.b16 %v523
        %v556 = vunpack.c.l.b16 %v524
        %v557 = vunpack.c.l.b16 %v525
        %v558 = vunpack.c.l.b16 %v526
        %v559 = vunpack.c.l.b16 %v527
        %v560 = vunpack.c.l.b16 %v528
        %v561 = vunpack.c.l.b16 %v529
        %v562 = vunpack.c.l.b16 %v530
        %v563 = vunpack.c.l.b16 %v531
        %v564 = vunpack.c.l.b16 %v532
        %v565 = vunpack.c.l.b16 %v533
        %v566 = vunpack.c.l.b16 %v534
        %v567 = vunpack.c.l.b16 %v535
        %v568 = vunpack.c.l.b16 %v536
        %v569 = vunpack.c.l.b16 %v537
        %v570 = vunpack.c.l.b16 %v538
        %v571 = vpack.c.b16 %v556, %v555
        %v572 = vpack.c.b16 %v558, %v557
        %v573 = vpack.c.b16 %v560, %v559
        %v574 = vpack.c.b16 %v562, %v561
        %v575 = vpack.c.b16 %v564, %v563
        %v576 = vpack.c.b16 %v566, %v565
        %v577 = vpack.c.b16 %v568, %v567
        %v578 = vpack.c.b16 %v570, %v569
        %587 = vmatprep.subr.bf16.mxu0 0
        %588 = vmatpush1.bf16.msra.mxu0 %v571
        %589 = vmatprep.subr.bf16.mxu0 0
        %590 = vmatpush1.bf16.msra.mxu0 %v572
        %591 = vmatprep.subr.bf16.mxu0 0
        %592 = vmatpush1.bf16.msra.mxu0 %v573
        %593 = vmatprep.subr.bf16.mxu0 0
        %594 = vmatpush1.bf16.msra.mxu0 %v574
        %595 = vmatprep.subr.bf16.mxu0 0
        %596 = vmatpush1.bf16.msra.mxu0 %v575
        %597 = vmatprep.subr.bf16.mxu0 0
        %598 = vmatpush1.bf16.msra.mxu0 %v576
        %599 = vmatprep.subr.bf16.mxu0 0
        %600 = vmatpush1.bf16.msra.mxu0 %v577
        %601 = vmatprep.subr.bf16.mxu0 0
        %602 = vmatpush1.bf16.msra.mxu0 %v578
        %603 = vmatprep.subr.bf16.mxu0 0
        %604 = vmatpush1.bf16.msra.mxu0 0
        %605 = vmatprep.subr.bf16.mxu0 0
        %606 = vmatpush1.bf16.msra.mxu0 0
        %607 = vmatprep.subr.bf16.mxu0 0
        %608 = vmatpush1.bf16.msra.mxu0 0
        %609 = vmatprep.subr.bf16.mxu0 0
        %610 = vmatpush1.bf16.msra.mxu0 0
        %611 = vmatprep.subr.bf16.mxu0 0
        %612 = vmatpush1.bf16.msra.mxu0 0
        %613 = vmatprep.subr.bf16.mxu0 0
        %614 = vmatpush1.bf16.msra.mxu0 0
        %615 = vmatprep.subr.bf16.mxu0 0
        %616 = vmatpush1.bf16.msra.mxu0 0
        %617 = vmatprep.subr.bf16.mxu0 0
        %618 = vmatpush1.bf16.msra.mxu0 0
        %619 = vmatprep.mubr.bf16.mxu0 0
        %620 = vmatmul.mubr.bf16.gmra.mrb[0].mxu0 %v515
        %v621 = vpop.f32.mrb[0].mxu0
        %v622 = vadd.f32 0.0, %v621
        %v623 = vpop.f32.mrb[0].mxu0
        %v624 = vpop.f32.mrb[0].mxu0
        %v625 = vadd.f32 0.0, %v624
        %v626 = vpop.f32.mrb[0].mxu0
        %627 = vmatprep.mubr.bf16.mxu0 0
        %628 = vmatmul.mubr.bf16.gmra.mrb[0].mxu0 %v517
        %v629 = vpop.f32.mrb[0].mxu0
        %v630 = vadd.f32 0.0, %v629
        %v631 = vpop.f32.mrb[0].mxu0
        %v632 = vpop.f32.mrb[0].mxu0
        %v633 = vadd.f32 0.0, %v632
        %v634 = vpop.f32.mrb[0].mxu0
        %635 = vmatprep.mubr.bf16.mxu0 0
        %636 = vmatmul.mubr.bf16.gmra.mrb[0].mxu0 %v519
        %v637 = vpop.f32.mrb[0].mxu0
        %v638 = vadd.f32 0.0, %v637
        %v639 = vpop.f32.mrb[0].mxu0
        %v640 = vpop.f32.mrb[0].mxu0
        %v641 = vadd.f32 0.0, %v640
        %v642 = vpop.f32.mrb[0].mxu0
        %643 = vmatprep.mubr.bf16.mxu0 0
        %644 = vmatmul.mubr.bf16.gmra.mrb[0].mxu0 %v521
        %v645 = vpop.f32.mrb[0].mxu0
        %v646 = vadd.f32 0.0, %v645
        %v647 = vpop.f32.mrb[0].mxu0
        %v648 = vpop.f32.mrb[0].mxu0
        %v649 = vadd.f32 0.0, %v648
        %v650 = vpop.f32.mrb[0].mxu0
        %651 = vdwg.mxu0
        %s652 = scalar_lea.vmem %s249, 64 [#allocation2]
        %v653 = vld [vmem:[%s652] sm:$0xf]
        %v654 = vld [vmem:[%s652 + $0x4] sm:$0xf]
        %v655 = vld [vmem:[%s652 + $0x8] sm:$0xf]
        %v656 = vld [vmem:[%s652 + $0xc] sm:$0xf]
        %v657 = vld [vmem:[%s652 + $0x10] sm:$0xf]
        %v658 = vld [vmem:[%s652 + $0x14] sm:$0xf]
        %v659 = vld [vmem:[%s652 + $0x18] sm:$0xf]
        %v660 = vld [vmem:[%s652 + $0x1c] sm:$0xf]
        %v661 = vld [vmem:[%s652 + $0x20] sm:$0xf]
        %v662 = vld [vmem:[%s652 + $0x24] sm:$0xf]
        %v663 = vld [vmem:[%s652 + $0x28] sm:$0xf]
        %v664 = vld [vmem:[%s652 + $0x2c] sm:$0xf]
        %v665 = vld [vmem:[%s652 + $0x30] sm:$0xf]
        %v666 = vld [vmem:[%s652 + $0x34] sm:$0xf]
        %v667 = vld [vmem:[%s652 + $0x38] sm:$0xf]
        %v668 = vld [vmem:[%s652 + $0x3c] sm:$0xf]
        %v685 = vunpack.c.l.b16 %v653
        %v686 = vunpack.c.l.b16 %v654
        %v687 = vunpack.c.l.b16 %v655
        %v688 = vunpack.c.l.b16 %v656
        %v689 = vunpack.c.l.b16 %v657
        %v690 = vunpack.c.l.b16 %v658
        %v691 = vunpack.c.l.b16 %v659
        %v692 = vunpack.c.l.b16 %v660
        %v693 = vunpack.c.l.b16 %v661
        %v694 = vunpack.c.l.b16 %v662
        %v695 = vunpack.c.l.b16 %v663
        %v696 = vunpack.c.l.b16 %v664
        %v697 = vunpack.c.l.b16 %v665
        %v698 = vunpack.c.l.b16 %v666
        %v699 = vunpack.c.l.b16 %v667
        %v700 = vunpack.c.l.b16 %v668
        %v701 = vpack.c.b16 %v686, %v685
        %v702 = vpack.c.b16 %v688, %v687
        %v703 = vpack.c.b16 %v690, %v689
        %v704 = vpack.c.b16 %v692, %v691
        %v705 = vpack.c.b16 %v694, %v693
        %v706 = vpack.c.b16 %v696, %v695
        %v707 = vpack.c.b16 %v698, %v697
        %v708 = vpack.c.b16 %v700, %v699
        %717 = vmatprep.subr.bf16.mxu0 0
        %718 = vmatpush1.bf16.msra.mxu0 %v701
        %719 = vmatprep.subr.bf16.mxu0 0
        %720 = vmatpush1.bf16.msra.mxu0 %v702
        %721 = vmatprep.subr.bf16.mxu0 0
        %722 = vmatpush1.bf16.msra.mxu0 %v703
        %723 = vmatprep.subr.bf16.mxu0 0
        %724 = vmatpush1.bf16.msra.mxu0 %v704
        %725 = vmatprep.subr.bf16.mxu0 0
        %726 = vmatpush1.bf16.msra.mxu0 %v705
        %727 = vmatprep.subr.bf16.mxu0 0
        %728 = vmatpush1.bf16.msra.mxu0 %v706
        %729 = vmatprep.subr.bf16.mxu0 0
        %730 = vmatpush1.bf16.msra.mxu0 %v707
        %731 = vmatprep.subr.bf16.mxu0 0
        %732 = vmatpush1.bf16.msra.mxu0 %v708
        %733 = vmatprep.subr.bf16.mxu0 0
        %734 = vmatpush1.bf16.msra.mxu0 0
        %735 = vmatprep.subr.bf16.mxu0 0
        %736 = vmatpush1.bf16.msra.mxu0 0
        %737 = vmatprep.subr.bf16.mxu0 0
        %738 = vmatpush1.bf16.msra.mxu0 0
        %739 = vmatprep.subr.bf16.mxu0 0
        %740 = vmatpush1.bf16.msra.mxu0 0
        %741 = vmatprep.subr.bf16.mxu0 0
        %742 = vmatpush1.bf16.msra.mxu0 0
        %743 = vmatprep.subr.bf16.mxu0 0
        %744 = vmatpush1.bf16.msra.mxu0 0
        %745 = vmatprep.subr.bf16.mxu0 0
        %746 = vmatpush1.bf16.msra.mxu0 0
        %747 = vmatprep.subr.bf16.mxu0 0
        %748 = vmatpush1.bf16.msra.mxu0 0
        %749 = vmatprep.mubr.bf16.mxu0 0
        %750 = vmatmul.mubr.bf16.gmra.mrb[0].mxu0 %v516
        %v751 = vpop.f32.mrb[0].mxu0
        %v752 = vadd.f32 0.0, %v751
        %v753 = vpop.f32.mrb[0].mxu0
        %v754 = vpop.f32.mrb[0].mxu0
        %v755 = vadd.f32 0.0, %v754
        %v756 = vpop.f32.mrb[0].mxu0
        %757 = vmatprep.mubr.bf16.mxu0 0
        %758 = vmatmul.mubr.bf16.gmra.mrb[0].mxu0 %v518
        %v759 = vpop.f32.mrb[0].mxu0
        %v760 = vadd.f32 0.0, %v759
        %v761 = vpop.f32.mrb[0].mxu0
        %v762 = vpop.f32.mrb[0].mxu0
        %v763 = vadd.f32 0.0, %v762
        %v764 = vpop.f32.mrb[0].mxu0
        %765 = vmatprep.mubr.bf16.mxu0 0
        %766 = vmatmul.mubr.bf16.gmra.mrb[0].mxu0 %v520
        %v767 = vpop.f32.mrb[0].mxu0
        %v768 = vadd.f32 0.0, %v767
        %v769 = vpop.f32.mrb[0].mxu0
        %v770 = vpop.f32.mrb[0].mxu0
        %v771 = vadd.f32 0.0, %v770
        %v772 = vpop.f32.mrb[0].mxu0
        %773 = vmatprep.mubr.bf16.mxu0 0
        %774 = vmatmul.mubr.bf16.gmra.mrb[0].mxu0 %v522
        %v775 = vpop.f32.mrb[0].mxu0
        %v776 = vadd.f32 0.0, %v775
        %v777 = vpop.f32.mrb[0].mxu0
        %v778 = vpop.f32.mrb[0].mxu0
        %v779 = vadd.f32 0.0, %v778
        %v780 = vpop.f32.mrb[0].mxu0
        %781 = vdwg.mxu0
        %v782 = vadd.f32 %v622, %v477
        %v783 = vadd.f32 %v752, %v479
        %v784 = vadd.f32 %v625, %v481
        %v785 = vadd.f32 %v755, %v483
        %v786 = vadd.f32 %v630, %v487
        %v787 = vadd.f32 %v760, %v489
        %v788 = vadd.f32 %v633, %v491
        %v789 = vadd.f32 %v763, %v493
        %v790 = vadd.f32 %v638, %v497
        %v791 = vadd.f32 %v768, %v499
        %v792 = vadd.f32 %v641, %v501
        %v793 = vadd.f32 %v771, %v503
        %v794 = vadd.f32 %v646, %v507
        %v795 = vadd.f32 %v776, %v509
        %v796 = vadd.f32 %v649, %v511
        %v797 = vadd.f32 %v779, %v513
        %v798 = vand.u32 2147483647, %v782
        %v799 = vand.u32 2147483647, %v783
        %v800 = vand.u32 2147483647, %v784
        %v801 = vand.u32 2147483647, %v785
        %v802 = vadd.f32 %v798, 1e-06
        %v803 = vadd.f32 %v799, 1e-06
        %v804 = vadd.f32 %v800, 1e-06
        %v805 = vadd.f32 %v801, 1e-06
        %v806 = vrcp.pop %v802
        %v807 = vrcp.pop %v803
        %v808 = vrcp.pop %v804
        %v809 = vrcp.pop %v805
        %v810 = vmul.f32 %v782, %v806
        %v811 = vmul.f32 %v783, %v807
        %v812 = vmul.f32 %v784, %v808
        %v813 = vmul.f32 %v785, %v809
        %v814 = vmul.f32 %v786, %v786
        %v815 = vmul.f32 %v787, %v787
        %v816 = vmul.f32 %v788, %v788
        %v817 = vmul.f32 %v789, %v789
        %v818 = vmul.f32 %v790, %v790
        %v819 = vmul.f32 %v791, %v791
        %v820 = vmul.f32 %v792, %v792
        %v821 = vmul.f32 %v793, %v793
        %v822 = vadd.f32 %v814, %v818
        %v823 = vadd.f32 %v815, %v819
        %v824 = vadd.f32 %v816, %v820
        %v825 = vadd.f32 %v817, %v821
        %v826 = vmul.f32 %v794, %v794
        %v827 = vmul.f32 %v795, %v795
        %v828 = vmul.f32 %v796, %v796
        %v829 = vmul.f32 %v797, %v797
        %v830 = vadd.f32 %v822, %v826
        %v831 = vadd.f32 %v823, %v827
        %v832 = vadd.f32 %v824, %v828
        %v833 = vadd.f32 %v825, %v829
        %v834 = vadd.f32 %v830, 1e-06
        %v835 = vadd.f32 %v831, 1e-06
        %v836 = vadd.f32 %v832, 1e-06
        %v837 = vadd.f32 %v833, 1e-06
        %v838 = vrsqrt.pop %v834
        %v839 = vrsqrt.pop %v835
        %v840 = vrsqrt.pop %v836
        %v841 = vrsqrt.pop %v837
        %v842 = vmul.f32 %v830, %v838
        %v843 = vmul.f32 %v831, %v839
        %v844 = vmul.f32 %v832, %v840
        %v845 = vmul.f32 %v833, %v841
        %v846 = vpack.c.bf16 %v800, %v798
        %v847 = vpack.c.bf16 %v801, %v799
        %v848 = vpack.c.bf16 %v844, %v842
        %v849 = vpack.c.bf16 %v845, %v843
        %850 = vset.pattern.permute.xlu0 1
        %851 = vperm.xlu0 %850, %v335
        %v852 = vpop.permute.xlu0 %851
        %854 = vset.pattern.permute.xlu0 1
        %855 = vperm.xlu0 %854, %v336
        %v856 = vpop.permute.xlu0 %855
        %858 = vset.pattern.permute.xlu0 1
        %859 = vperm.xlu0 %858, %v337
        %v860 = vpop.permute.xlu0 %859
        %862 = vset.pattern.permute.xlu0 1
        %863 = vperm.xlu0 %862, %v338
        %v864 = vpop.permute.xlu0 %863
        %v870 = vunpack.c.l.b16 %v331
        %v871 = vunpack.c.l.b16 %v332
        %v872 = vunpack.c.l.b16 %v333
        %v873 = vunpack.c.l.b16 %v334
        %v874 = vpack.c.b16 %v871, %v870
        %v875 = vpack.c.b16 %v873, %v872
        %vm876 = vcmask 261120
        %v878 = vsel %vm876, %v874, 0
        %v881 = vsel %vm876, %v875, 0
        %883 = vmatprep.subr.bf16.mxu0 %v847
        %884 = vmatpush1.bf16.msra.mxu0 %v846
        %885 = vmatprep.subr.bf16.mxu0 %v849
        %886 = vmatpush1.bf16.msra.mxu0 %v848
        %887 = vmatprep.subr.bf16.mxu0 0
        %888 = vmatpush1.bf16.msra.mxu0 0
        %889 = vmatprep.subr.bf16.mxu0 0
        %890 = vmatpush1.bf16.msra.mxu0 0
        %891 = vmatprep.subr.bf16.mxu0 0
        %892 = vmatpush1.bf16.msra.mxu0 0
        %893 = vmatprep.subr.bf16.mxu0 0
        %894 = vmatpush1.bf16.msra.mxu0 0
        %895 = vmatprep.subr.bf16.mxu0 0
        %896 = vmatpush1.bf16.msra.mxu0 0
        %897 = vmatprep.subr.bf16.mxu0 0
        %898 = vmatpush1.bf16.msra.mxu0 0
        %899 = vmatprep.subr.bf16.mxu0 0
        %900 = vmatpush1.bf16.msra.mxu0 0
        %901 = vmatprep.subr.bf16.mxu0 0
        %902 = vmatpush1.bf16.msra.mxu0 0
        %903 = vmatprep.subr.bf16.mxu0 0
        %904 = vmatpush1.bf16.msra.mxu0 0
        %905 = vmatprep.subr.bf16.mxu0 0
        %906 = vmatpush1.bf16.msra.mxu0 0
        %907 = vmatprep.subr.bf16.mxu0 0
        %908 = vmatpush1.bf16.msra.mxu0 0
        %909 = vmatprep.subr.bf16.mxu0 0
        %910 = vmatpush1.bf16.msra.mxu0 0
        %911 = vmatprep.subr.bf16.mxu0 0
        %912 = vmatpush1.bf16.msra.mxu0 0
        %913 = vmatprep.subr.bf16.mxu0 0
        %914 = vmatpush1.bf16.msra.mxu0 0
        %915 = vmatprep.mubr.bf16.mxu0 0
        %916 = vmatmul.mubr.bf16.gmra.mrb[0].mxu0 %v878
        %v917 = vpop.f32.mrb[0].mxu0
        %v918 = vadd.f32 %v852, %v917
        %v919 = vpop.f32.mrb[0].mxu0
        %v920 = vadd.f32 %v852, %v919
        %v921 = vpop.f32.mrb[0].mxu0
        %v922 = vadd.f32 %v856, %v921
        %v923 = vpop.f32.mrb[0].mxu0
        %v924 = vadd.f32 %v856, %v923
        %925 = vmatprep.mubr.bf16.mxu0 0
        %926 = vmatmul.mubr.bf16.gmra.mrb[0].mxu0 %v881
        %v927 = vpop.f32.mrb[0].mxu0
        %v928 = vadd.f32 %v860, %v927
        %v929 = vpop.f32.mrb[0].mxu0
        %v930 = vadd.f32 %v860, %v929
        %v931 = vpop.f32.mrb[0].mxu0
        %v932 = vadd.f32 %v864, %v931
        %v933 = vpop.f32.mrb[0].mxu0
        %v934 = vadd.f32 %v864, %v933
        %935 = vdwg.mxu0
        %v936 = vmax.f32 %v918, 0.0
        %v937 = vmax.f32 %v920, 0.0
        %v938 = vmax.f32 %v922, 0.0
        %v939 = vmax.f32 %v924, 0.0
        %v940 = vmax.f32 %v928, 0.0
        %v941 = vmax.f32 %v930, 0.0
        %v942 = vmax.f32 %v932, 0.0
        %v943 = vmax.f32 %v934, 0.0
        %v944 = vmul.f32 %v936, %v810
        %v945 = vmul.f32 %v937, %v811
        %v946 = vmul.f32 %v938, %v812
        %v947 = vmul.f32 %v939, %v813
        %v948 = vmul.f32 %v940, %v838
        %v949 = vmul.f32 %v941, %v839
        %v950 = vmul.f32 %v942, %v840
        %v951 = vmul.f32 %v943, %v841
        %v952 = vmul.f32 %v948, %v786
        %v953 = vmul.f32 %v949, %v787
        %v954 = vmul.f32 %v950, %v788
        %v955 = vmul.f32 %v951, %v789
        %v956 = vmul.f32 %v948, %v790
        %v957 = vmul.f32 %v949, %v791
        %v958 = vmul.f32 %v950, %v792
        %v959 = vmul.f32 %v951, %v793
        %v960 = vmul.f32 %v948, %v794
        %v961 = vmul.f32 %v949, %v795
        %v962 = vmul.f32 %v950, %v796
        %v963 = vmul.f32 %v951, %v797
        %s964 = scalar_lea.vmem [#allocation5], 48
        %v965 = vld [vmem:[%s964] sm:$0xf]
        %v966 = vld [vmem:[%s964 + $0x4] sm:$0xf]
        %v967 = vld [vmem:[%s964 + $0x8] sm:$0xf]
        %v968 = vld [vmem:[%s964 + $0xc] sm:$0xf]
        %v969 = vld [vmem:[%s964 + $0x10] sm:$0xf]
        %v970 = vld [vmem:[%s964 + $0x14] sm:$0xf]
        %v971 = vld [vmem:[%s964 + $0x18] sm:$0xf]
        %v972 = vld [vmem:[%s964 + $0x1c] sm:$0xf]
        %v973 = vld [vmem:[%s964 + $0x20] sm:$0xf]
        %v974 = vld [vmem:[%s964 + $0x24] sm:$0xf]
        %v975 = vld [vmem:[%s964 + $0x28] sm:$0xf]
        %v976 = vld [vmem:[%s964 + $0x2c] sm:$0xf]
        %v977 = vmul.f32 %v952, %v952
        %v978 = vmul.f32 %v953, %v953
        %v979 = vmul.f32 %v954, %v954
        %v980 = vmul.f32 %v955, %v955
        %v981 = vmul.f32 %v956, %v956
        %v982 = vmul.f32 %v957, %v957
        %v983 = vmul.f32 %v958, %v958
        %v984 = vmul.f32 %v959, %v959
        %v985 = vadd.f32 %v977, %v981
        %v986 = vadd.f32 %v978, %v982
        %v987 = vadd.f32 %v979, %v983
        %v988 = vadd.f32 %v980, %v984
        %v989 = vmul.f32 %v960, %v960
        %v990 = vmul.f32 %v961, %v961
        %v991 = vmul.f32 %v962, %v962
        %v992 = vmul.f32 %v963, %v963
        %v993 = vadd.f32 %v985, %v989
        %v994 = vadd.f32 %v986, %v990
        %v995 = vadd.f32 %v987, %v991
        %v996 = vadd.f32 %v988, %v992
        %v997 = vadd.f32 %v993, 1e-06
        %v998 = vadd.f32 %v994, 1e-06
        %v999 = vadd.f32 %v995, 1e-06
        %v1000 = vadd.f32 %v996, 1e-06
        %v1001 = vrsqrt.pop %v997
        %v1002 = vrsqrt.pop %v998
        %v1003 = vrsqrt.pop %v999
        %v1004 = vrsqrt.pop %v1000
        %v1005 = vmul.f32 %v993, %v1001
        %v1006 = vmul.f32 %v994, %v1002
        %v1007 = vmul.f32 %v995, %v1003
        %v1008 = vmul.f32 %v996, %v1004
        %v1009 = vpack.c.bf16 %v946, %v944
        %v1010 = vpack.c.bf16 %v947, %v945
        %v1011 = vpack.c.bf16 %v1007, %v1005
        %v1012 = vpack.c.bf16 %v1008, %v1006
        %v1013 = vpack.c.bf16 %v954, %v952
        %v1014 = vpack.c.bf16 %v955, %v953
        %v1015 = vpack.c.bf16 %v958, %v956
        %v1016 = vpack.c.bf16 %v959, %v957
        %v1017 = vpack.c.bf16 %v962, %v960
        %v1018 = vpack.c.bf16 %v963, %v961
        %1019 = vset.pattern.permute.xlu0 2
        %1020 = vperm.xlu0 %1019, %v335
        %v1021 = vpop.permute.xlu0 %1020
        %1023 = vset.pattern.permute.xlu0 2
        %1024 = vperm.xlu0 %1023, %v336
        %v1025 = vpop.permute.xlu0 %1024
        %1027 = vset.pattern.permute.xlu0 2
        %1028 = vperm.xlu0 %1027, %v337
        %v1029 = vpop.permute.xlu0 %1028
        %1031 = vset.pattern.permute.xlu0 2
        %1032 = vperm.xlu0 %1031, %v338
        %v1033 = vpop.permute.xlu0 %1032
        %1035 = vset.pattern.permute.xlu0 2
        %1036 = vperm.xlu0 %1035, %v339
        %v1037 = vpop.permute.xlu0 %1036
        %1039 = vset.pattern.permute.xlu0 2
        %1040 = vperm.xlu0 %1039, %v340
        %v1041 = vpop.permute.xlu0 %1040
        %1043 = vset.pattern.permute.xlu0 2
        %1044 = vperm.xlu0 %1043, %v341
        %v1045 = vpop.permute.xlu0 %1044
        %1047 = vset.pattern.permute.xlu0 2
        %1048 = vperm.xlu0 %1047, %v342
        %v1049 = vpop.permute.xlu0 %1048
        %v1059 = vunpack.c.l.b16 %v965
        %v1060 = vunpack.c.l.b16 %v966
        %v1061 = vunpack.c.l.b16 %v967
        %v1062 = vunpack.c.l.b16 %v968
        %v1063 = vunpack.c.l.b16 %v969
        %v1064 = vunpack.c.l.b16 %v970
        %v1065 = vunpack.c.l.b16 %v971
        %v1066 = vunpack.c.l.b16 %v972
        %v1067 = vpack.c.b16 %v1060, %v1059
        %v1068 = vpack.c.b16 %v1062, %v1061
        %v1069 = vpack.c.b16 %v1064, %v1063
        %v1070 = vpack.c.b16 %v1066, %v1065
        %v1072 = vsel %vm429, %v1067, 0
        %v1075 = vsel %vm429, %v1068, 0
        %v1078 = vsel %vm429, %v1069, 0
        %v1081 = vsel %vm429, %v1070, 0
        %1083 = vmatprep.subr.bf16.mxu0 %v1010
        %1084 = vmatpush1.bf16.msra.mxu0 %v1009
        %1085 = vmatprep.subr.bf16.mxu0 %v1012
        %1086 = vmatpush1.bf16.msra.mxu0 %v1011
        %1087 = vmatprep.subr.bf16.mxu0 %v1014
        %1088 = vmatpush1.bf16.msra.mxu0 %v1013
        %1089 = vmatprep.subr.bf16.mxu0 %v1016
        %1090 = vmatpush1.bf16.msra.mxu0 %v1015
        %1091 = vmatprep.subr.bf16.mxu0 %v1018
        %1092 = vmatpush1.bf16.msra.mxu0 %v1017
        %1093 = vmatprep.subr.bf16.mxu0 0
        %1094 = vmatpush1.bf16.msra.mxu0 0
        %1095 = vmatprep.subr.bf16.mxu0 0
        %1096 = vmatpush1.bf16.msra.mxu0 0
        %1097 = vmatprep.subr.bf16.mxu0 0
        %1098 = vmatpush1.bf16.msra.mxu0 0
        %1099 = vmatprep.subr.bf16.mxu0 0
        %1100 = vmatpush1.bf16.msra.mxu0 0
        %1101 = vmatprep.subr.bf16.mxu0 0
        %1102 = vmatpush1.bf16.msra.mxu0 0
        %1103 = vmatprep.subr.bf16.mxu0 0
        %1104 = vmatpush1.bf16.msra.mxu0 0
        %1105 = vmatprep.subr.bf16.mxu0 0
        %1106 = vmatpush1.bf16.msra.mxu0 0
        %1107 = vmatprep.subr.bf16.mxu0 0
        %1108 = vmatpush1.bf16.msra.mxu0 0
        %1109 = vmatprep.subr.bf16.mxu0 0
        %1110 = vmatpush1.bf16.msra.mxu0 0
        %1111 = vmatprep.subr.bf16.mxu0 0
        %1112 = vmatpush1.bf16.msra.mxu0 0
        %1113 = vmatprep.subr.bf16.mxu0 0
        %1114 = vmatpush1.bf16.msra.mxu0 0
        %1115 = vmatprep.mubr.bf16.mxu0 0
        %1116 = vmatmul.mubr.bf16.gmra.mrb[0].mxu0 %v1072
        %v1117 = vpop.f32.mrb[0].mxu0
        %v1118 = vadd.f32 %v1021, %v1117
        %v1119 = vpop.f32.mrb[0].mxu0
        %v1120 = vadd.f32 %v1021, %v1119
        %v1121 = vpop.f32.mrb[0].mxu0
        %v1122 = vadd.f32 %v1025, %v1121
        %v1123 = vpop.f32.mrb[0].mxu0
        %v1124 = vadd.f32 %v1025, %v1123
        %1125 = vmatprep.mubr.bf16.mxu0 0
        %1126 = vmatmul.mubr.bf16.gmra.mrb[0].mxu0 %v1075
        %v1127 = vpop.f32.mrb[0].mxu0
        %v1128 = vadd.f32 %v1029, %v1127
        %v1129 = vpop.f32.mrb[0].mxu0
        %v1130 = vadd.f32 %v1029, %v1129
        %v1131 = vpop.f32.mrb[0].mxu0
        %v1132 = vadd.f32 %v1033, %v1131
        %v1133 = vpop.f32.mrb[0].mxu0
        %v1134 = vadd.f32 %v1033, %v1133
        %1135 = vmatprep.mubr.bf16.mxu0 0
        %1136 = vmatmul.mubr.bf16.gmra.mrb[0].mxu0 %v1078
        %v1137 = vpop.f32.mrb[0].mxu0
        %v1138 = vadd.f32 %v1037, %v1137
        %v1139 = vpop.f32.mrb[0].mxu0
        %v1140 = vadd.f32 %v1037, %v1139
        %v1141 = vpop.f32.mrb[0].mxu0
        %v1142 = vadd.f32 %v1041, %v1141
        %v1143 = vpop.f32.mrb[0].mxu0
        %v1144 = vadd.f32 %v1041, %v1143
        %1145 = vmatprep.mubr.bf16.mxu0 0
        %1146 = vmatmul.mubr.bf16.gmra.mrb[0].mxu0 %v1081
        %v1147 = vpop.f32.mrb[0].mxu0
        %v1148 = vadd.f32 %v1045, %v1147
        %v1149 = vpop.f32.mrb[0].mxu0
        %v1150 = vadd.f32 %v1045, %v1149
        %v1151 = vpop.f32.mrb[0].mxu0
        %v1152 = vadd.f32 %v1049, %v1151
        %v1153 = vpop.f32.mrb[0].mxu0
        %v1154 = vadd.f32 %v1049, %v1153
        %1155 = vdwg.mxu0
        %v1156 = vpack.c.bf16 %v1122, %v1118
        %v1157 = vpack.c.bf16 %v1124, %v1120
        %v1158 = vpack.c.bf16 %v1132, %v1128
        %v1159 = vpack.c.bf16 %v1134, %v1130
        %v1160 = vpack.c.bf16 %v1142, %v1138
        %v1161 = vpack.c.bf16 %v1144, %v1140
        %v1162 = vpack.c.bf16 %v1152, %v1148
        %v1163 = vpack.c.bf16 %v1154, %v1150
        %1164 = vmatprep.subr.bf16.mxu0 0
        %1165 = vmatpush1.bf16.msra.mxu0 %v571
        %1166 = vmatprep.subr.bf16.mxu0 0
        %1167 = vmatpush1.bf16.msra.mxu0 %v572
        %1168 = vmatprep.subr.bf16.mxu0 0
        %1169 = vmatpush1.bf16.msra.mxu0 %v573
        %1170 = vmatprep.subr.bf16.mxu0 0
        %1171 = vmatpush1.bf16.msra.mxu0 %v574
        %1172 = vmatprep.subr.bf16.mxu0 0
        %1173 = vmatpush1.bf16.msra.mxu0 %v575
        %1174 = vmatprep.subr.bf16.mxu0 0
        %1175 = vmatpush1.bf16.msra.mxu0 %v576
        %1176 = vmatprep.subr.bf16.mxu0 0
        %1177 = vmatpush1.bf16.msra.mxu0 %v577
        %1178 = vmatprep.subr.bf16.mxu0 0
        %1179 = vmatpush1.bf16.msra.mxu0 %v578
        %1180 = vmatprep.subr.bf16.mxu0 0
        %1181 = vmatpush1.bf16.msra.mxu0 0
        %1182 = vmatprep.subr.bf16.mxu0 0
        %1183 = vmatpush1.bf16.msra.mxu0 0
        %1184 = vmatprep.subr.bf16.mxu0 0
        %1185 = vmatpush1.bf16.msra.mxu0 0
        %1186 = vmatprep.subr.bf16.mxu0 0
        %1187 = vmatpush1.bf16.msra.mxu0 0
        %1188 = vmatprep.subr.bf16.mxu0 0
        %1189 = vmatpush1.bf16.msra.mxu0 0
        %1190 = vmatprep.subr.bf16.mxu0 0
        %1191 = vmatpush1.bf16.msra.mxu0 0
        %1192 = vmatprep.subr.bf16.mxu0 0
        %1193 = vmatpush1.bf16.msra.mxu0 0
        %1194 = vmatprep.subr.bf16.mxu0 0
        %1195 = vmatpush1.bf16.msra.mxu0 0
        %1196 = vmatprep.mubr.bf16.mxu0 0
        %1197 = vmatmul.mubr.bf16.gmra.mrb[0].mxu0 %v1156
        %v1198 = vpop.f32.mrb[0].mxu0
        %v1199 = vadd.f32 0.0, %v1198
        %v1200 = vpop.f32.mrb[0].mxu0
        %v1201 = vpop.f32.mrb[0].mxu0
        %v1202 = vadd.f32 0.0, %v1201
        %v1203 = vpop.f32.mrb[0].mxu0
        %1204 = vmatprep.mubr.bf16.mxu0 0
        %1205 = vmatmul.mubr.bf16.gmra.mrb[0].mxu0 %v1158
        %v1206 = vpop.f32.mrb[0].mxu0
        %v1207 = vadd.f32 0.0, %v1206
        %v1208 = vpop.f32.mrb[0].mxu0
        %v1209 = vpop.f32.mrb[0].mxu0
        %v1210 = vadd.f32 0.0, %v1209
        %v1211 = vpop.f32.mrb[0].mxu0
        %1212 = vmatprep.mubr.bf16.mxu0 0
        %1213 = vmatmul.mubr.bf16.gmra.mrb[0].mxu0 %v1160
        %v1214 = vpop.f32.mrb[0].mxu0
        %v1215 = vadd.f32 0.0, %v1214
        %v1216 = vpop.f32.mrb[0].mxu0
        %v1217 = vpop.f32.mrb[0].mxu0
        %v1218 = vadd.f32 0.0, %v1217
        %v1219 = vpop.f32.mrb[0].mxu0
        %1220 = vmatprep.mubr.bf16.mxu0 0
        %1221 = vmatmul.mubr.bf16.gmra.mrb[0].mxu0 %v1162
        %v1222 = vpop.f32.mrb[0].mxu0
        %v1223 = vadd.f32 0.0, %v1222
        %v1224 = vpop.f32.mrb[0].mxu0
        %v1225 = vpop.f32.mrb[0].mxu0
        %v1226 = vadd.f32 0.0, %v1225
        %v1227 = vpop.f32.mrb[0].mxu0
        %1228 = vdwg.mxu0
        %1229 = vmatprep.subr.bf16.mxu0 0
        %1230 = vmatpush1.bf16.msra.mxu0 %v701
        %1231 = vmatprep.subr.bf16.mxu0 0
        %1232 = vmatpush1.bf16.msra.mxu0 %v702
        %1233 = vmatprep.subr.bf16.mxu0 0
        %1234 = vmatpush1.bf16.msra.mxu0 %v703
        %1235 = vmatprep.subr.bf16.mxu0 0
        %1236 = vmatpush1.bf16.msra.mxu0 %v704
        %1237 = vmatprep.subr.bf16.mxu0 0
        %1238 = vmatpush1.bf16.msra.mxu0 %v705
        %1239 = vmatprep.subr.bf16.mxu0 0
        %1240 = vmatpush1.bf16.msra.mxu0 %v706
        %1241 = vmatprep.subr.bf16.mxu0 0
        %1242 = vmatpush1.bf16.msra.mxu0 %v707
        %1243 = vmatprep.subr.bf16.mxu0 0
        %1244 = vmatpush1.bf16.msra.mxu0 %v708
        %1245 = vmatprep.subr.bf16.mxu0 0
        %1246 = vmatpush1.bf16.msra.mxu0 0
        %1247 = vmatprep.subr.bf16.mxu0 0
        %1248 = vmatpush1.bf16.msra.mxu0 0
        %1249 = vmatprep.subr.bf16.mxu0 0
        %1250 = vmatpush1.bf16.msra.mxu0 0
        %1251 = vmatprep.subr.bf16.mxu0 0
        %1252 = vmatpush1.bf16.msra.mxu0 0
        %1253 = vmatprep.subr.bf16.mxu0 0
        %1254 = vmatpush1.bf16.msra.mxu0 0
        %1255 = vmatprep.subr.bf16.mxu0 0
        %1256 = vmatpush1.bf16.msra.mxu0 0
        %1257 = vmatprep.subr.bf16.mxu0 0
        %1258 = vmatpush1.bf16.msra.mxu0 0
        %1259 = vmatprep.subr.bf16.mxu0 0
        %1260 = vmatpush1.bf16.msra.mxu0 0
        %1261 = vmatprep.mubr.bf16.mxu0 0
        %1262 = vmatmul.mubr.bf16.gmra.mrb[0].mxu0 %v1157
        %v1263 = vpop.f32.mrb[0].mxu0
        %v1264 = vadd.f32 0.0, %v1263
        %v1265 = vpop.f32.mrb[0].mxu0
        %v1266 = vpop.f32.mrb[0].mxu0
        %v1267 = vadd.f32 0.0, %v1266
        %v1268 = vpop.f32.mrb[0].mxu0
        %1269 = vmatprep.mubr.bf16.mxu0 0
        %1270 = vmatmul.mubr.bf16.gmra.mrb[0].mxu0 %v1159
        %v1271 = vpop.f32.mrb[0].mxu0
        %v1272 = vadd.f32 0.0, %v1271
        %v1273 = vpop.f32.mrb[0].mxu0
        %v1274 = vpop.f32.mrb[0].mxu0
        %v1275 = vadd.f32 0.0, %v1274
        %v1276 = vpop.f32.mrb[0].mxu0
        %1277 = vmatprep.mubr.bf16.mxu0 0
        %1278 = vmatmul.mubr.bf16.gmra.mrb[0].mxu0 %v1161
        %v1279 = vpop.f32.mrb[0].mxu0
        %v1280 = vadd.f32 0.0, %v1279
        %v1281 = vpop.f32.mrb[0].mxu0
        %v1282 = vpop.f32.mrb[0].mxu0
        %v1283 = vadd.f32 0.0, %v1282
        %v1284 = vpop.f32.mrb[0].mxu0
        %1285 = vmatprep.mubr.bf16.mxu0 0
        %1286 = vmatmul.mubr.bf16.gmra.mrb[0].mxu0 %v1163
        %v1287 = vpop.f32.mrb[0].mxu0
        %v1288 = vadd.f32 0.0, %v1287
        %v1289 = vpop.f32.mrb[0].mxu0
        %v1290 = vpop.f32.mrb[0].mxu0
        %v1291 = vadd.f32 0.0, %v1290
        %v1292 = vpop.f32.mrb[0].mxu0
        %1293 = vdwg.mxu0
        %v1294 = vadd.f32 %v1199, %v1118
        %v1295 = vadd.f32 %v1264, %v1120
        %v1296 = vadd.f32 %v1202, %v1122
        %v1297 = vadd.f32 %v1267, %v1124
        %v1298 = vadd.f32 %v1207, %v1128
        %v1299 = vadd.f32 %v1272, %v1130
        %v1300 = vadd.f32 %v1210, %v1132
        %v1301 = vadd.f32 %v1275, %v1134
        %v1302 = vadd.f32 %v1215, %v1138
        %v1303 = vadd.f32 %v1280, %v1140
        %v1304 = vadd.f32 %v1218, %v1142
        %v1305 = vadd.f32 %v1283, %v1144
        %v1306 = vadd.f32 %v1223, %v1148
        %v1307 = vadd.f32 %v1288, %v1150
        %v1308 = vadd.f32 %v1226, %v1152
        %v1309 = vadd.f32 %v1291, %v1154
        %v1310 = vand.u32 2147483647, %v1294
        %v1311 = vand.u32 2147483647, %v1295
        %v1312 = vand.u32 2147483647, %v1296
        %v1313 = vand.u32 2147483647, %v1297
        %v1314 = vadd.f32 %v1310, 1e-06
        %v1315 = vadd.f32 %v1311, 1e-06
        %v1316 = vadd.f32 %v1312, 1e-06
        %v1317 = vadd.f32 %v1313, 1e-06
        %v1318 = vrcp.pop %v1314
        %v1319 = vrcp.pop %v1315
        %v1320 = vrcp.pop %v1316
        %v1321 = vrcp.pop %v1317
        %v1322 = vmul.f32 %v1294, %v1318
        %v1323 = vmul.f32 %v1295, %v1319
        %v1324 = vmul.f32 %v1296, %v1320
        %v1325 = vmul.f32 %v1297, %v1321
        %v1326 = vmul.f32 %v1298, %v1298
        %v1327 = vmul.f32 %v1299, %v1299
        %v1328 = vmul.f32 %v1300, %v1300
        %v1329 = vmul.f32 %v1301, %v1301
        %v1330 = vmul.f32 %v1302, %v1302
        %v1331 = vmul.f32 %v1303, %v1303
        %v1332 = vmul.f32 %v1304, %v1304
        %v1333 = vmul.f32 %v1305, %v1305
        %v1334 = vadd.f32 %v1326, %v1330
        %v1335 = vadd.f32 %v1327, %v1331
        %v1336 = vadd.f32 %v1328, %v1332
        %v1337 = vadd.f32 %v1329, %v1333
        %v1338 = vmul.f32 %v1306, %v1306
        %v1339 = vmul.f32 %v1307, %v1307
        %v1340 = vmul.f32 %v1308, %v1308
        %v1341 = vmul.f32 %v1309, %v1309
        %v1342 = vadd.f32 %v1334, %v1338
        %v1343 = vadd.f32 %v1335, %v1339
        %v1344 = vadd.f32 %v1336, %v1340
        %v1345 = vadd.f32 %v1337, %v1341
        %v1346 = vadd.f32 %v1342, 1e-06
        %v1347 = vadd.f32 %v1343, 1e-06
        %v1348 = vadd.f32 %v1344, 1e-06
        %v1349 = vadd.f32 %v1345, 1e-06
        %v1350 = vrsqrt.pop %v1346
        %v1351 = vrsqrt.pop %v1347
        %v1352 = vrsqrt.pop %v1348
        %v1353 = vrsqrt.pop %v1349
        %v1354 = vmul.f32 %v1342, %v1350
        %v1355 = vmul.f32 %v1343, %v1351
        %v1356 = vmul.f32 %v1344, %v1352
        %v1357 = vmul.f32 %v1345, %v1353
        %v1358 = vpack.c.bf16 %v1312, %v1310
        %v1359 = vpack.c.bf16 %v1313, %v1311
        %v1360 = vpack.c.bf16 %v1356, %v1354
        %v1361 = vpack.c.bf16 %v1357, %v1355
        %1362 = vset.pattern.permute.xlu0 3
        %1363 = vperm.xlu0 %1362, %v335
        %v1364 = vpop.permute.xlu0 %1363
        %1366 = vset.pattern.permute.xlu0 3
        %1367 = vperm.xlu0 %1366, %v336
        %v1368 = vpop.permute.xlu0 %1367
        %1370 = vset.pattern.permute.xlu0 3
        %1371 = vperm.xlu0 %1370, %v337
        %v1372 = vpop.permute.xlu0 %1371
        %1374 = vset.pattern.permute.xlu0 3
        %1375 = vperm.xlu0 %1374, %v338
        %v1376 = vpop.permute.xlu0 %1375
        %v1382 = vunpack.c.l.b16 %v973
        %v1383 = vunpack.c.l.b16 %v974
        %v1384 = vunpack.c.l.b16 %v975
        %v1385 = vunpack.c.l.b16 %v976
        %v1386 = vpack.c.b16 %v1383, %v1382
        %v1387 = vpack.c.b16 %v1385, %v1384
        %v1389 = vsel %vm876, %v1386, 0
        %v1392 = vsel %vm876, %v1387, 0
        %1394 = vmatprep.subr.bf16.mxu0 %v1359
        %1395 = vmatpush1.bf16.msra.mxu0 %v1358
        %1396 = vmatprep.subr.bf16.mxu0 %v1361
        %1397 = vmatpush1.bf16.msra.mxu0 %v1360
        %1398 = vmatprep.subr.bf16.mxu0 0
        %1399 = vmatpush1.bf16.msra.mxu0 0
        %1400 = vmatprep.subr.bf16.mxu0 0
        %1401 = vmatpush1.bf16.msra.mxu0 0
        %1402 = vmatprep.subr.bf16.mxu0 0
        %1403 = vmatpush1.bf16.msra.mxu0 0
        %1404 = vmatprep.subr.bf16.mxu0 0
        %1405 = vmatpush1.bf16.msra.mxu0 0
        %1406 = vmatprep.subr.bf16.mxu0 0
        %1407 = vmatpush1.bf16.msra.mxu0 0
        %1408 = vmatprep.subr.bf16.mxu0 0
        %1409 = vmatpush1.bf16.msra.mxu0 0
        %1410 = vmatprep.subr.bf16.mxu0 0
        %1411 = vmatpush1.bf16.msra.mxu0 0
        %1412 = vmatprep.subr.bf16.mxu0 0
        %1413 = vmatpush1.bf16.msra.mxu0 0
        %1414 = vmatprep.subr.bf16.mxu0 0
        %1415 = vmatpush1.bf16.msra.mxu0 0
        %1416 = vmatprep.subr.bf16.mxu0 0
        %1417 = vmatpush1.bf16.msra.mxu0 0
        %1418 = vmatprep.subr.bf16.mxu0 0
        %1419 = vmatpush1.bf16.msra.mxu0 0
        %1420 = vmatprep.subr.bf16.mxu0 0
        %1421 = vmatpush1.bf16.msra.mxu0 0
        %1422 = vmatprep.subr.bf16.mxu0 0
        %1423 = vmatpush1.bf16.msra.mxu0 0
        %1424 = vmatprep.subr.bf16.mxu0 0
        %1425 = vmatpush1.bf16.msra.mxu0 0
        %1426 = vmatprep.mubr.bf16.mxu0 0
        %1427 = vmatmul.mubr.bf16.gmra.mrb[0].mxu0 %v1389
        %v1428 = vpop.f32.mrb[0].mxu0
        %v1429 = vadd.f32 %v1364, %v1428
        %v1430 = vpop.f32.mrb[0].mxu0
        %v1431 = vadd.f32 %v1364, %v1430
        %v1432 = vpop.f32.mrb[0].mxu0
        %v1433 = vadd.f32 %v1368, %v1432
        %v1434 = vpop.f32.mrb[0].mxu0
        %v1435 = vadd.f32 %v1368, %v1434
        %1436 = vmatprep.mubr.bf16.mxu0 0
        %1437 = vmatmul.mubr.bf16.gmra.mrb[0].mxu0 %v1392
        %v1438 = vpop.f32.mrb[0].mxu0
        %v1439 = vadd.f32 %v1372, %v1438
        %v1440 = vpop.f32.mrb[0].mxu0
        %v1441 = vadd.f32 %v1372, %v1440
        %v1442 = vpop.f32.mrb[0].mxu0
        %v1443 = vadd.f32 %v1376, %v1442
        %v1444 = vpop.f32.mrb[0].mxu0
        %v1445 = vadd.f32 %v1376, %v1444
        %1446 = vdwg.mxu0
        %v1447 = vmax.f32 %v1429, 0.0
        %v1448 = vmax.f32 %v1431, 0.0
        %v1449 = vmax.f32 %v1433, 0.0
        %v1450 = vmax.f32 %v1435, 0.0
        %v1451 = vmax.f32 %v1439, 0.0
        %v1452 = vmax.f32 %v1441, 0.0
        %v1453 = vmax.f32 %v1443, 0.0
        %v1454 = vmax.f32 %v1445, 0.0
        %v1455 = vmul.f32 %v1447, %v1322
        %v1456 = vmul.f32 %v1448, %v1323
        %v1457 = vmul.f32 %v1449, %v1324
        %v1458 = vmul.f32 %v1450, %v1325
        %v1459 = vmul.f32 %v1451, %v1350
        %v1460 = vmul.f32 %v1452, %v1351
        %v1461 = vmul.f32 %v1453, %v1352
        %v1462 = vmul.f32 %v1454, %v1353
        %v1463 = vmul.f32 %v1459, %v1298
        %v1464 = vmul.f32 %v1460, %v1299
        %v1465 = vmul.f32 %v1461, %v1300
        %v1466 = vmul.f32 %v1462, %v1301
        %v1467 = vmul.f32 %v1459, %v1302
        %v1468 = vmul.f32 %v1460, %v1303
        %v1469 = vmul.f32 %v1461, %v1304
        %v1470 = vmul.f32 %v1462, %v1305
        %v1471 = vmul.f32 %v1459, %v1306
        %v1472 = vmul.f32 %v1460, %v1307
        %v1473 = vmul.f32 %v1461, %v1308
        %v1474 = vmul.f32 %v1462, %v1309
        %v1475 = vld [vmem:[#allocation7] sm:$0xf]
        %v1476 = vld [vmem:[#allocation7 + $0x4] sm:$0xf]
        %v1477 = vld [vmem:[#allocation7 + $0x8] sm:$0xf]
        %v1478 = vld [vmem:[#allocation7 + $0xc] sm:$0xf]
        %v1479 = vld [vmem:[#allocation7 + $0x10] sm:$0xf]
        %v1480 = vld [vmem:[#allocation7 + $0x14] sm:$0xf]
        %v1481 = vld [vmem:[#allocation7 + $0x18] sm:$0xf]
        %v1482 = vld [vmem:[#allocation7 + $0x1c] sm:$0xf]
        %v1483 = vld [vmem:[#allocation7 + $0x20] sm:$0xf]
        %v1484 = vld [vmem:[#allocation7 + $0x24] sm:$0xf]
        %v1485 = vld [vmem:[#allocation7 + $0x28] sm:$0xf]
        %v1486 = vld [vmem:[#allocation7 + $0x2c] sm:$0xf]
        %v1487 = vld [vmem:[#allocation7 + $0x30] sm:$0xf]
        %v1488 = vld [vmem:[#allocation7 + $0x34] sm:$0xf]
        %v1489 = vld [vmem:[#allocation7 + $0x38] sm:$0xf]
        %v1490 = vld [vmem:[#allocation7 + $0x3c] sm:$0xf]
        %v1491 = vld [vmem:[#allocation7 + $0x40] sm:$0xf]
        %v1492 = vld [vmem:[#allocation7 + $0x44] sm:$0xf]
        %v1493 = vld [vmem:[#allocation7 + $0x48] sm:$0xf]
        %v1494 = vld [vmem:[#allocation7 + $0x4c] sm:$0xf]
        %v1495 = vld [vmem:[#allocation7 + $0x50] sm:$0xf]
        %v1496 = vld [vmem:[#allocation7 + $0x54] sm:$0xf]
        %v1497 = vld [vmem:[#allocation7 + $0x58] sm:$0xf]
        %v1498 = vld [vmem:[#allocation7 + $0x5c] sm:$0xf]
        %v1499 = vld [vmem:[#allocation7 + $0x60] sm:$0xf]
        %v1500 = vmul.f32 %v1463, %v1463
        %v1501 = vmul.f32 %v1464, %v1464
        %v1502 = vmul.f32 %v1465, %v1465
        %v1503 = vmul.f32 %v1466, %v1466
        %v1504 = vmul.f32 %v1467, %v1467
        %v1505 = vmul.f32 %v1468, %v1468
        %v1506 = vmul.f32 %v1469, %v1469
        %v1507 = vmul.f32 %v1470, %v1470
        %v1508 = vadd.f32 %v1500, %v1504
        %v1509 = vadd.f32 %v1501, %v1505
        %v1510 = vadd.f32 %v1502, %v1506
        %v1511 = vadd.f32 %v1503, %v1507
        %v1512 = vmul.f32 %v1471, %v1471
        %v1513 = vmul.f32 %v1472, %v1472
        %v1514 = vmul.f32 %v1473, %v1473
        %v1515 = vmul.f32 %v1474, %v1474
        %v1516 = vadd.f32 %v1508, %v1512
        %v1517 = vadd.f32 %v1509, %v1513
        %v1518 = vadd.f32 %v1510, %v1514
        %v1519 = vadd.f32 %v1511, %v1515
        %v1520 = vadd.f32 %v1516, 1e-06
        %v1521 = vadd.f32 %v1517, 1e-06
        %v1522 = vadd.f32 %v1518, 1e-06
        %v1523 = vadd.f32 %v1519, 1e-06
        %v1524 = vrsqrt.pop %v1520
        %v1525 = vrsqrt.pop %v1521
        %v1526 = vrsqrt.pop %v1522
        %v1527 = vrsqrt.pop %v1523
        %v1528 = vmul.f32 %v1516, %v1524
        %v1529 = vmul.f32 %v1517, %v1525
        %v1530 = vmul.f32 %v1518, %v1526
        %v1531 = vmul.f32 %v1519, %v1527
        %v1532 = vpack.c.bf16 %v1457, %v1455
        %v1533 = vpack.c.bf16 %v1458, %v1456
        %v1534 = vpack.c.bf16 %v1530, %v1528
        %v1535 = vpack.c.bf16 %v1531, %v1529
        %v1544 = vunpack.c.l.b16 %v1475
        %v1545 = vunpack.c.l.b16 %v1476
        %v1546 = vunpack.c.l.b16 %v1477
        %v1547 = vunpack.c.l.b16 %v1478
        %v1548 = vunpack.c.l.b16 %v1479
        %v1549 = vunpack.c.l.b16 %v1480
        %v1550 = vunpack.c.l.b16 %v1481
        %v1551 = vunpack.c.l.b16 %v1482
        %v1552 = vpack.c.b16 %v1545, %v1544
        %v1553 = vpack.c.b16 %v1547, %v1546
        %v1554 = vpack.c.b16 %v1549, %v1548
        %v1555 = vpack.c.b16 %v1551, %v1550
        %v1557 = vsel %vm876, %v1552, 0
        %v1560 = vsel %vm876, %v1553, 0
        %v1563 = vsel %vm876, %v1554, 0
        %v1566 = vsel %vm876, %v1555, 0
        %1568 = vmatprep.subr.bf16.mxu0 %v1533
        %1569 = vmatpush1.bf16.msra.mxu0 %v1532
        %1570 = vmatprep.subr.bf16.mxu0 %v1535
        %1571 = vmatpush1.bf16.msra.mxu0 %v1534
        %1572 = vmatprep.subr.bf16.mxu0 0
        %1573 = vmatpush1.bf16.msra.mxu0 0
        %1574 = vmatprep.subr.bf16.mxu0 0
        %1575 = vmatpush1.bf16.msra.mxu0 0
        %1576 = vmatprep.subr.bf16.mxu0 0
        %1577 = vmatpush1.bf16.msra.mxu0 0
        %1578 = vmatprep.subr.bf16.mxu0 0
        %1579 = vmatpush1.bf16.msra.mxu0 0
        %1580 = vmatprep.subr.bf16.mxu0 0
        %1581 = vmatpush1.bf16.msra.mxu0 0
        %1582 = vmatprep.subr.bf16.mxu0 0
        %1583 = vmatpush1.bf16.msra.mxu0 0
        %1584 = vmatprep.subr.bf16.mxu0 0
        %1585 = vmatpush1.bf16.msra.mxu0 0
        %1586 = vmatprep.subr.bf16.mxu0 0
        %1587 = vmatpush1.bf16.msra.mxu0 0
        %1588 = vmatprep.subr.bf16.mxu0 0
        %1589 = vmatpush1.bf16.msra.mxu0 0
        %1590 = vmatprep.subr.bf16.mxu0 0
        %1591 = vmatpush1.bf16.msra.mxu0 0
        %1592 = vmatprep.subr.bf16.mxu0 0
        %1593 = vmatpush1.bf16.msra.mxu0 0
        %1594 = vmatprep.subr.bf16.mxu0 0
        %1595 = vmatpush1.bf16.msra.mxu0 0
        %1596 = vmatprep.subr.bf16.mxu0 0
        %1597 = vmatpush1.bf16.msra.mxu0 0
        %1598 = vmatprep.subr.bf16.mxu0 0
        %1599 = vmatpush1.bf16.msra.mxu0 0
        %1600 = vmatprep.mubr.bf16.mxu0 0
        %1601 = vmatmul.mubr.bf16.gmra.mrb[0].mxu0 %v1557
        %v1602 = vpop.f32.mrb[0].mxu0
        %v1603 = vadd.f32 0.0, %v1602
        %v1604 = vpop.f32.mrb[0].mxu0
        %v1605 = vadd.f32 0.0, %v1604
        %v1606 = vpop.f32.mrb[0].mxu0
        %v1607 = vadd.f32 0.0, %v1606
        %v1608 = vpop.f32.mrb[0].mxu0
        %v1609 = vadd.f32 0.0, %v1608
        %1610 = vmatprep.mubr.bf16.mxu0 0
        %1611 = vmatmul.mubr.bf16.gmra.mrb[0].mxu0 %v1560
        %v1612 = vpop.f32.mrb[0].mxu0
        %v1613 = vadd.f32 0.0, %v1612
        %v1614 = vpop.f32.mrb[0].mxu0
        %v1615 = vadd.f32 0.0, %v1614
        %v1616 = vpop.f32.mrb[0].mxu0
        %v1617 = vadd.f32 0.0, %v1616
        %v1618 = vpop.f32.mrb[0].mxu0
        %v1619 = vadd.f32 0.0, %v1618
        %1620 = vmatprep.mubr.bf16.mxu0 0
        %1621 = vmatmul.mubr.bf16.gmra.mrb[0].mxu0 %v1563
        %v1622 = vpop.f32.mrb[0].mxu0
        %v1623 = vadd.f32 0.0, %v1622
        %v1624 = vpop.f32.mrb[0].mxu0
        %v1625 = vadd.f32 0.0, %v1624
        %v1626 = vpop.f32.mrb[0].mxu0
        %v1627 = vadd.f32 0.0, %v1626
        %v1628 = vpop.f32.mrb[0].mxu0
        %v1629 = vadd.f32 0.0, %v1628
        %1630 = vmatprep.mubr.bf16.mxu0 0
        %1631 = vmatmul.mubr.bf16.gmra.mrb[0].mxu0 %v1566
        %v1632 = vpop.f32.mrb[0].mxu0
        %v1633 = vadd.f32 0.0, %v1632
        %v1634 = vpop.f32.mrb[0].mxu0
        %v1635 = vadd.f32 0.0, %v1634
        %v1636 = vpop.f32.mrb[0].mxu0
        %v1637 = vadd.f32 0.0, %v1636
        %v1638 = vpop.f32.mrb[0].mxu0
        %v1639 = vadd.f32 0.0, %v1638
        %1640 = vdwg.mxu0
        %v1641 = vpack.c.bf16 %v1607, %v1603
        %v1642 = vpack.c.bf16 %v1609, %v1605
        %v1643 = vpack.c.bf16 %v1617, %v1613
        %v1644 = vpack.c.bf16 %v1619, %v1615
        %v1645 = vpack.c.bf16 %v1627, %v1623
        %v1646 = vpack.c.bf16 %v1629, %v1625
        %v1647 = vpack.c.bf16 %v1637, %v1633
        %v1648 = vpack.c.bf16 %v1639, %v1635
        %1649 = vmatprep.subr.bf16.mxu0 0
        %1650 = vmatpush1.bf16.msra.mxu0 %v571
        %1651 = vmatprep.subr.bf16.mxu0 0
        %1652 = vmatpush1.bf16.msra.mxu0 %v572
        %1653 = vmatprep.subr.bf16.mxu0 0
        %1654 = vmatpush1.bf16.msra.mxu0 %v573
        %1655 = vmatprep.subr.bf16.mxu0 0
        %1656 = vmatpush1.bf16.msra.mxu0 %v574
        %1657 = vmatprep.subr.bf16.mxu0 0
        %1658 = vmatpush1.bf16.msra.mxu0 %v575
        %1659 = vmatprep.subr.bf16.mxu0 0
        %1660 = vmatpush1.bf16.msra.mxu0 %v576
        %1661 = vmatprep.subr.bf16.mxu0 0
        %1662 = vmatpush1.bf16.msra.mxu0 %v577
        %1663 = vmatprep.subr.bf16.mxu0 0
        %1664 = vmatpush1.bf16.msra.mxu0 %v578
        %1665 = vmatprep.subr.bf16.mxu0 0
        %1666 = vmatpush1.bf16.msra.mxu0 0
        %1667 = vmatprep.subr.bf16.mxu0 0
        %1668 = vmatpush1.bf16.msra.mxu0 0
        %1669 = vmatprep.subr.bf16.mxu0 0
        %1670 = vmatpush1.bf16.msra.mxu0 0
        %1671 = vmatprep.subr.bf16.mxu0 0
        %1672 = vmatpush1.bf16.msra.mxu0 0
        %1673 = vmatprep.subr.bf16.mxu0 0
        %1674 = vmatpush1.bf16.msra.mxu0 0
        %1675 = vmatprep.subr.bf16.mxu0 0
        %1676 = vmatpush1.bf16.msra.mxu0 0
        %1677 = vmatprep.subr.bf16.mxu0 0
        %1678 = vmatpush1.bf16.msra.mxu0 0
        %1679 = vmatprep.subr.bf16.mxu0 0
        %1680 = vmatpush1.bf16.msra.mxu0 0
        %1681 = vmatprep.mubr.bf16.mxu0 0
        %1682 = vmatmul.mubr.bf16.gmra.mrb[0].mxu0 %v1641
        %v1683 = vpop.f32.mrb[0].mxu0
        %v1684 = vadd.f32 0.0, %v1683
        %v1685 = vpop.f32.mrb[0].mxu0
        %v1686 = vpop.f32.mrb[0].mxu0
        %v1687 = vadd.f32 0.0, %v1686
        %v1688 = vpop.f32.mrb[0].mxu0
        %1689 = vmatprep.mubr.bf16.mxu0 0
        %1690 = vmatmul.mubr.bf16.gmra.mrb[0].mxu0 %v1643
        %v1691 = vpop.f32.mrb[0].mxu0
        %v1692 = vadd.f32 0.0, %v1691
        %v1693 = vpop.f32.mrb[0].mxu0
        %v1694 = vpop.f32.mrb[0].mxu0
        %v1695 = vadd.f32 0.0, %v1694
        %v1696 = vpop.f32.mrb[0].mxu0
        %1697 = vmatprep.mubr.bf16.mxu0 0
        %1698 = vmatmul.mubr.bf16.gmra.mrb[0].mxu0 %v1645
        %v1699 = vpop.f32.mrb[0].mxu0
        %v1700 = vadd.f32 0.0, %v1699
        %v1701 = vpop.f32.mrb[0].mxu0
        %v1702 = vpop.f32.mrb[0].mxu0
        %v1703 = vadd.f32 0.0, %v1702
        %v1704 = vpop.f32.mrb[0].mxu0
        %1705 = vmatprep.mubr.bf16.mxu0 0
        %1706 = vmatmul.mubr.bf16.gmra.mrb[0].mxu0 %v1647
        %v1707 = vpop.f32.mrb[0].mxu0
        %v1708 = vadd.f32 0.0, %v1707
        %v1709 = vpop.f32.mrb[0].mxu0
        %v1710 = vpop.f32.mrb[0].mxu0
        %v1711 = vadd.f32 0.0, %v1710
        %v1712 = vpop.f32.mrb[0].mxu0
        %1713 = vdwg.mxu0
        %1714 = vmatprep.subr.bf16.mxu0 0
        %1715 = vmatpush1.bf16.msra.mxu0 %v701
        %1716 = vmatprep.subr.bf16.mxu0 0
        %1717 = vmatpush1.bf16.msra.mxu0 %v702
        %1718 = vmatprep.subr.bf16.mxu0 0
        %1719 = vmatpush1.bf16.msra.mxu0 %v703
        %1720 = vmatprep.subr.bf16.mxu0 0
        %1721 = vmatpush1.bf16.msra.mxu0 %v704
        %1722 = vmatprep.subr.bf16.mxu0 0
        %1723 = vmatpush1.bf16.msra.mxu0 %v705
        %1724 = vmatprep.subr.bf16.mxu0 0
        %1725 = vmatpush1.bf16.msra.mxu0 %v706
        %1726 = vmatprep.subr.bf16.mxu0 0
        %1727 = vmatpush1.bf16.msra.mxu0 %v707
        %1728 = vmatprep.subr.bf16.mxu0 0
        %1729 = vmatpush1.bf16.msra.mxu0 %v708
        %1730 = vmatprep.subr.bf16.mxu0 0
        %1731 = vmatpush1.bf16.msra.mxu0 0
        %1732 = vmatprep.subr.bf16.mxu0 0
        %1733 = vmatpush1.bf16.msra.mxu0 0
        %1734 = vmatprep.subr.bf16.mxu0 0
        %1735 = vmatpush1.bf16.msra.mxu0 0
        %1736 = vmatprep.subr.bf16.mxu0 0
        %1737 = vmatpush1.bf16.msra.mxu0 0
        %1738 = vmatprep.subr.bf16.mxu0 0
        %1739 = vmatpush1.bf16.msra.mxu0 0
        %1740 = vmatprep.subr.bf16.mxu0 0
        %1741 = vmatpush1.bf16.msra.mxu0 0
        %1742 = vmatprep.subr.bf16.mxu0 0
        %1743 = vmatpush1.bf16.msra.mxu0 0
        %1744 = vmatprep.subr.bf16.mxu0 0
        %1745 = vmatpush1.bf16.msra.mxu0 0
        %1746 = vmatprep.mubr.bf16.mxu0 0
        %1747 = vmatmul.mubr.bf16.gmra.mrb[0].mxu0 %v1642
        %v1748 = vpop.f32.mrb[0].mxu0
        %v1749 = vadd.f32 0.0, %v1748
        %v1750 = vpop.f32.mrb[0].mxu0
        %v1751 = vpop.f32.mrb[0].mxu0
        %v1752 = vadd.f32 0.0, %v1751
        %v1753 = vpop.f32.mrb[0].mxu0
        %1754 = vmatprep.mubr.bf16.mxu0 0
        %1755 = vmatmul.mubr.bf16.gmra.mrb[0].mxu0 %v1644
        %v1756 = vpop.f32.mrb[0].mxu0
        %v1757 = vadd.f32 0.0, %v1756
        %v1758 = vpop.f32.mrb[0].mxu0
        %v1759 = vpop.f32.mrb[0].mxu0
        %v1760 = vadd.f32 0.0, %v1759
        %v1761 = vpop.f32.mrb[0].mxu0
        %1762 = vmatprep.mubr.bf16.mxu0 0
        %1763 = vmatmul.mubr.bf16.gmra.mrb[0].mxu0 %v1646
        %v1764 = vpop.f32.mrb[0].mxu0
        %v1765 = vadd.f32 0.0, %v1764
        %v1766 = vpop.f32.mrb[0].mxu0
        %v1767 = vpop.f32.mrb[0].mxu0
        %v1768 = vadd.f32 0.0, %v1767
        %v1769 = vpop.f32.mrb[0].mxu0
        %1770 = vmatprep.mubr.bf16.mxu0 0
        %1771 = vmatmul.mubr.bf16.gmra.mrb[0].mxu0 %v1648
        %v1772 = vpop.f32.mrb[0].mxu0
        %v1773 = vadd.f32 0.0, %v1772
        %v1774 = vpop.f32.mrb[0].mxu0
        %v1775 = vpop.f32.mrb[0].mxu0
        %v1776 = vadd.f32 0.0, %v1775
        %v1777 = vpop.f32.mrb[0].mxu0
        %1778 = vdwg.mxu0
        %1779 = vrot.lane.b32.xlu0 %v1552, 96
        %v1780 = vpop.permute.xlu0 %1779
        %1781 = vrot.lane.b32.xlu0 %v1553, 96
        %v1782 = vpop.permute.xlu0 %1781
        %1783 = vrot.lane.b32.xlu0 %v1554, 96
        %v1784 = vpop.permute.xlu0 %1783
        %1785 = vrot.lane.b32.xlu0 %v1555, 96
        %v1786 = vpop.permute.xlu0 %1785
        %vm1787 = vcmask 130048
        %v1789 = vsel %vm1787, %v1780, 0
        %v1792 = vsel %vm1787, %v1782, 0
        %v1795 = vsel %vm1787, %v1784, 0
        %v1798 = vsel %vm1787, %v1786, 0
        %1800 = vmatprep.subr.bf16.mxu0 %v1533
        %1801 = vmatpush1.bf16.msra.mxu0 %v1532
        %1802 = vmatprep.subr.bf16.mxu0 0
        %1803 = vmatpush1.bf16.msra.mxu0 0
        %1804 = vmatprep.subr.bf16.mxu0 0
        %1805 = vmatpush1.bf16.msra.mxu0 0
        %1806 = vmatprep.subr.bf16.mxu0 0
        %1807 = vmatpush1.bf16.msra.mxu0 0
        %1808 = vmatprep.subr.bf16.mxu0 0
        %1809 = vmatpush1.bf16.msra.mxu0 0
        %1810 = vmatprep.subr.bf16.mxu0 0
        %1811 = vmatpush1.bf16.msra.mxu0 0
        %1812 = vmatprep.subr.bf16.mxu0 0
        %1813 = vmatpush1.bf16.msra.mxu0 0
        %1814 = vmatprep.subr.bf16.mxu0 0
        %1815 = vmatpush1.bf16.msra.mxu0 0
        %1816 = vmatprep.subr.bf16.mxu0 0
        %1817 = vmatpush1.bf16.msra.mxu0 0
        %1818 = vmatprep.subr.bf16.mxu0 0
        %1819 = vmatpush1.bf16.msra.mxu0 0
        %1820 = vmatprep.subr.bf16.mxu0 0
        %1821 = vmatpush1.bf16.msra.mxu0 0
        %1822 = vmatprep.subr.bf16.mxu0 0
        %1823 = vmatpush1.bf16.msra.mxu0 0
        %1824 = vmatprep.subr.bf16.mxu0 0
        %1825 = vmatpush1.bf16.msra.mxu0 0
        %1826 = vmatprep.subr.bf16.mxu0 0
        %1827 = vmatpush1.bf16.msra.mxu0 0
        %1828 = vmatprep.subr.bf16.mxu0 0
        %1829 = vmatpush1.bf16.msra.mxu0 0
        %1830 = vmatprep.subr.bf16.mxu0 0
        %1831 = vmatpush1.bf16.msra.mxu0 0
        %1832 = vmatprep.mubr.bf16.mxu0 0
        %1833 = vmatmul.mubr.bf16.gmra.mrb[0].mxu0 %v1789
        %v1834 = vpop.f32.mrb[0].mxu0
        %v1835 = vadd.f32 0.0, %v1834
        %v1836 = vpop.f32.mrb[0].mxu0
        %v1837 = vadd.f32 0.0, %v1836
        %v1838 = vpop.f32.mrb[0].mxu0
        %v1839 = vadd.f32 0.0, %v1838
        %v1840 = vpop.f32.mrb[0].mxu0
        %v1841 = vadd.f32 0.0, %v1840
        %1842 = vmatprep.mubr.bf16.mxu0 0
        %1843 = vmatmul.mubr.bf16.gmra.mrb[0].mxu0 %v1792
        %v1844 = vpop.f32.mrb[0].mxu0
        %v1845 = vadd.f32 0.0, %v1844
        %v1846 = vpop.f32.mrb[0].mxu0
        %v1847 = vadd.f32 0.0, %v1846
        %v1848 = vpop.f32.mrb[0].mxu0
        %v1849 = vadd.f32 0.0, %v1848
        %v1850 = vpop.f32.mrb[0].mxu0
        %v1851 = vadd.f32 0.0, %v1850
        %1852 = vmatprep.mubr.bf16.mxu0 0
        %1853 = vmatmul.mubr.bf16.gmra.mrb[0].mxu0 %v1795
        %v1854 = vpop.f32.mrb[0].mxu0
        %v1855 = vadd.f32 0.0, %v1854
        %v1856 = vpop.f32.mrb[0].mxu0
        %v1857 = vadd.f32 0.0, %v1856
        %v1858 = vpop.f32.mrb[0].mxu0
        %v1859 = vadd.f32 0.0, %v1858
        %v1860 = vpop.f32.mrb[0].mxu0
        %v1861 = vadd.f32 0.0, %v1860
        %1862 = vmatprep.mubr.bf16.mxu0 0
        %1863 = vmatmul.mubr.bf16.gmra.mrb[0].mxu0 %v1798
        %v1864 = vpop.f32.mrb[0].mxu0
        %v1865 = vadd.f32 0.0, %v1864
        %v1866 = vpop.f32.mrb[0].mxu0
        %v1867 = vadd.f32 0.0, %v1866
        %v1868 = vpop.f32.mrb[0].mxu0
        %v1869 = vadd.f32 0.0, %v1868
        %v1870 = vpop.f32.mrb[0].mxu0
        %v1871 = vadd.f32 0.0, %v1870
        %1872 = vdwg.mxu0
        %v1873 = vadd.f32 %v1684, %v1835
        %v1874 = vadd.f32 %v1749, %v1837
        %v1875 = vadd.f32 %v1687, %v1839
        %v1876 = vadd.f32 %v1752, %v1841
        %v1877 = vadd.f32 %v1692, %v1845
        %v1878 = vadd.f32 %v1757, %v1847
        %v1879 = vadd.f32 %v1695, %v1849
        %v1880 = vadd.f32 %v1760, %v1851
        %v1881 = vadd.f32 %v1700, %v1855
        %v1882 = vadd.f32 %v1765, %v1857
        %v1883 = vadd.f32 %v1703, %v1859
        %v1884 = vadd.f32 %v1768, %v1861
        %v1885 = vadd.f32 %v1708, %v1865
        %v1886 = vadd.f32 %v1773, %v1867
        %v1887 = vadd.f32 %v1711, %v1869
        %v1888 = vadd.f32 %v1776, %v1871
        %1889 = vset.pattern.permute.xlu0 4
        %1890 = vperm.xlu0 %1889, %v335
        %v1891 = vpop.permute.xlu0 %1890
        %1893 = vset.pattern.permute.xlu0 4
        %1894 = vperm.xlu0 %1893, %v336
        %v1895 = vpop.permute.xlu0 %1894
        %1897 = vset.pattern.permute.xlu0 4
        %1898 = vperm.xlu0 %1897, %v337
        %v1899 = vpop.permute.xlu0 %1898
        %1901 = vset.pattern.permute.xlu0 4
        %1902 = vperm.xlu0 %1901, %v338
        %v1903 = vpop.permute.xlu0 %1902
        %1905 = vset.pattern.permute.xlu0 4
        %1906 = vperm.xlu0 %1905, %v339
        %v1907 = vpop.permute.xlu0 %1906
        %1909 = vset.pattern.permute.xlu0 4
        %1910 = vperm.xlu0 %1909, %v340
        %v1911 = vpop.permute.xlu0 %1910
        %1913 = vset.pattern.permute.xlu0 4
        %1914 = vperm.xlu0 %1913, %v341
        %v1915 = vpop.permute.xlu0 %1914
        %1917 = vset.pattern.permute.xlu0 4
        %1918 = vperm.xlu0 %1917, %v342
        %v1919 = vpop.permute.xlu0 %1918
        %v1921 = vadd.f32 %v1873, %v1891
        %v1922 = vadd.f32 %v1874, %v1891
        %v1923 = vadd.f32 %v1875, %v1895
        %v1924 = vadd.f32 %v1876, %v1895
        %v1925 = vadd.f32 %v1877, %v1899
        %v1926 = vadd.f32 %v1878, %v1899
        %v1927 = vadd.f32 %v1879, %v1903
        %v1928 = vadd.f32 %v1880, %v1903
        %v1929 = vadd.f32 %v1881, %v1907
        %v1930 = vadd.f32 %v1882, %v1907
        %v1931 = vadd.f32 %v1883, %v1911
        %v1932 = vadd.f32 %v1884, %v1911
        %v1933 = vadd.f32 %v1885, %v1915
        %v1934 = vadd.f32 %v1886, %v1915
        %v1935 = vadd.f32 %v1887, %v1919
        %v1936 = vadd.f32 %v1888, %v1919
        %v1937 = vld [vmem:[%s4] sm:$0xff]
        %v1938 = vld [vmem:[%s4 + $0x8] sm:$0xff]
        %v1939 = vld [vmem:[%s4 + $0x10] sm:$0xff]
        %v1940 = vld [vmem:[%s4 + $0x18] sm:$0xff]
        %v1941 = vld [vmem:[%s4 + $0x20] sm:$0xff]
        %v1942 = vld [vmem:[%s4 + $0x28] sm:$0xff]
        %v1943 = vld [vmem:[%s4 + $0x30] sm:$0xff]
        %v1944 = vld [vmem:[%s4 + $0x38] sm:$0xff]
        %v1945 = vld [vmem:[%s4 + $0x40] sm:$0xff]
        %v1946 = vld [vmem:[%s4 + $0x48] sm:$0xff]
        %v1947 = vld [vmem:[%s4 + $0x50] sm:$0xff]
        %v1948 = vld [vmem:[%s4 + $0x58] sm:$0xff]
        %v1949 = vld [vmem:[%s4 + $0x60] sm:$0xff]
        %v1950 = vld [vmem:[%s4 + $0x68] sm:$0xff]
        %v1951 = vld [vmem:[%s4 + $0x70] sm:$0xff]
        %v1952 = vld [vmem:[%s4 + $0x78] sm:$0xff]
        %v1953 = vpack.c.bf16 %v1923, %v1921
        %v1954 = vpack.c.bf16 %v1924, %v1922
        %v1955 = vpack.c.bf16 %v1927, %v1925
        %v1956 = vpack.c.bf16 %v1928, %v1926
        %v1957 = vpack.c.bf16 %v1931, %v1929
        %v1958 = vpack.c.bf16 %v1932, %v1930
        %v1959 = vpack.c.bf16 %v1935, %v1933
        %v1960 = vpack.c.bf16 %v1936, %v1934
        %1962 = vset.pattern.permute.xlu0 5
        %1963 = vperm.xlu0 %1962, %v1937
        %v1964 = vpop.permute.xlu0 %1963
        %1967 = vset.pattern.permute.xlu0 5
        %1968 = vperm.xlu0 %1967, %v1938
        %v1969 = vpop.permute.xlu0 %1968
        %1972 = vset.pattern.permute.xlu0 5
        %1973 = vperm.xlu0 %1972, %v1939
        %v1974 = vpop.permute.xlu0 %1973
        %1977 = vset.pattern.permute.xlu0 5
        %1978 = vperm.xlu0 %1977, %v1940
        %v1979 = vpop.permute.xlu0 %1978
        %1982 = vset.pattern.permute.xlu0 5
        %1983 = vperm.xlu0 %1982, %v1941
        %v1984 = vpop.permute.xlu0 %1983
        %1987 = vset.pattern.permute.xlu0 5
        %1988 = vperm.xlu0 %1987, %v1942
        %v1989 = vpop.permute.xlu0 %1988
        %1992 = vset.pattern.permute.xlu0 5
        %1993 = vperm.xlu0 %1992, %v1943
        %v1994 = vpop.permute.xlu0 %1993
        %1997 = vset.pattern.permute.xlu0 5
        %1998 = vperm.xlu0 %1997, %v1944
        %v1999 = vpop.permute.xlu0 %1998
        %2002 = vset.pattern.permute.xlu0 5
        %2003 = vperm.xlu0 %2002, %v1945
        %v2004 = vpop.permute.xlu0 %2003
        %2007 = vset.pattern.permute.xlu0 5
        %2008 = vperm.xlu0 %2007, %v1946
        %v2009 = vpop.permute.xlu0 %2008
        %2012 = vset.pattern.permute.xlu0 5
        %2013 = vperm.xlu0 %2012, %v1947
        %v2014 = vpop.permute.xlu0 %2013
        %2017 = vset.pattern.permute.xlu0 5
        %2018 = vperm.xlu0 %2017, %v1948
        %v2019 = vpop.permute.xlu0 %2018
        %2022 = vset.pattern.permute.xlu0 5
        %2023 = vperm.xlu0 %2022, %v1949
        %v2024 = vpop.permute.xlu0 %2023
        %2027 = vset.pattern.permute.xlu0 5
        %2028 = vperm.xlu0 %2027, %v1950
        %v2029 = vpop.permute.xlu0 %2028
        %2032 = vset.pattern.permute.xlu0 5
        %2033 = vperm.xlu0 %2032, %v1951
        %v2034 = vpop.permute.xlu0 %2033
        %2037 = vset.pattern.permute.xlu0 5
        %2038 = vperm.xlu0 %2037, %v1952
        %v2039 = vpop.permute.xlu0 %2038
        %v2057 = vunpack.c.l.b16 %v1483
        %v2058 = vunpack.c.l.b16 %v1484
        %v2059 = vunpack.c.l.b16 %v1485
        %v2060 = vunpack.c.l.b16 %v1486
        %v2061 = vunpack.c.l.b16 %v1487
        %v2062 = vunpack.c.l.b16 %v1488
        %v2063 = vunpack.c.l.b16 %v1489
        %v2064 = vunpack.c.l.b16 %v1490
        %v2065 = vunpack.c.l.b16 %v1491
        %v2066 = vunpack.c.l.b16 %v1492
        %v2067 = vunpack.c.l.b16 %v1493
        %v2068 = vunpack.c.l.b16 %v1494
        %v2069 = vunpack.c.l.b16 %v1495
        %v2070 = vunpack.c.l.b16 %v1496
        %v2071 = vunpack.c.l.b16 %v1497
        %v2072 = vunpack.c.l.b16 %v1498
        %v2073 = vpack.c.b16 %v2058, %v2057
        %v2074 = vpack.c.b16 %v2060, %v2059
        %v2075 = vpack.c.b16 %v2062, %v2061
        %v2076 = vpack.c.b16 %v2064, %v2063
        %v2077 = vpack.c.b16 %v2066, %v2065
        %v2078 = vpack.c.b16 %v2068, %v2067
        %v2079 = vpack.c.b16 %v2070, %v2069
        %v2080 = vpack.c.b16 %v2072, %v2071
        %vm2081 = vcmask 523264
        %v2083 = vsel %vm2081, %v2073, 0
        %v2086 = vsel %vm2081, %v2074, 0
        %v2089 = vsel %vm2081, %v2075, 0
        %v2092 = vsel %vm2081, %v2076, 0
        %v2095 = vsel %vm2081, %v2077, 0
        %v2098 = vsel %vm2081, %v2078, 0
        %v2101 = vsel %vm2081, %v2079, 0
        %v2104 = vsel %vm2081, %v2080, 0
        %2106 = vmatprep.subr.bf16.mxu0 %v1954
        %2107 = vmatpush1.bf16.msra.mxu0 %v1953
        %2108 = vmatprep.subr.bf16.mxu0 %v1956
        %2109 = vmatpush1.bf16.msra.mxu0 %v1955
        %2110 = vmatprep.subr.bf16.mxu0 %v1958
        %2111 = vmatpush1.bf16.msra.mxu0 %v1957
        %2112 = vmatprep.subr.bf16.mxu0 %v1960
        %2113 = vmatpush1.bf16.msra.mxu0 %v1959
        %2114 = vmatprep.subr.bf16.mxu0 0
        %2115 = vmatpush1.bf16.msra.mxu0 0
        %2116 = vmatprep.subr.bf16.mxu0 0
        %2117 = vmatpush1.bf16.msra.mxu0 0
        %2118 = vmatprep.subr.bf16.mxu0 0
        %2119 = vmatpush1.bf16.msra.mxu0 0
        %2120 = vmatprep.subr.bf16.mxu0 0
        %2121 = vmatpush1.bf16.msra.mxu0 0
        %2122 = vmatprep.subr.bf16.mxu0 0
        %2123 = vmatpush1.bf16.msra.mxu0 0
        %2124 = vmatprep.subr.bf16.mxu0 0
        %2125 = vmatpush1.bf16.msra.mxu0 0
        %2126 = vmatprep.subr.bf16.mxu0 0
        %2127 = vmatpush1.bf16.msra.mxu0 0
        %2128 = vmatprep.subr.bf16.mxu0 0
        %2129 = vmatpush1.bf16.msra.mxu0 0
        %2130 = vmatprep.subr.bf16.mxu0 0
        %2131 = vmatpush1.bf16.msra.mxu0 0
        %2132 = vmatprep.subr.bf16.mxu0 0
        %2133 = vmatpush1.bf16.msra.mxu0 0
        %2134 = vmatprep.subr.bf16.mxu0 0
        %2135 = vmatpush1.bf16.msra.mxu0 0
        %2136 = vmatprep.subr.bf16.mxu0 0
        %2137 = vmatpush1.bf16.msra.mxu0 0
        %2138 = vmatprep.mubr.bf16.mxu0 0
        %2139 = vmatmul.mubr.bf16.gmra.mrb[0].mxu0 %v2083
        %v2140 = vpop.f32.mrb[0].mxu0
        %v2141 = vadd.f32 %v1964, %v2140
        %v2142 = vpop.f32.mrb[0].mxu0
        %v2143 = vadd.f32 %v1964, %v2142
        %v2144 = vpop.f32.mrb[0].mxu0
        %v2145 = vadd.f32 %v1969, %v2144
        %v2146 = vpop.f32.mrb[0].mxu0
        %v2147 = vadd.f32 %v1969, %v2146
        %2148 = vmatprep.mubr.bf16.mxu0 0
        %2149 = vmatmul.mubr.bf16.gmra.mrb[0].mxu0 %v2086
        %v2150 = vpop.f32.mrb[0].mxu0
        %v2151 = vadd.f32 %v1974, %v2150
        %v2152 = vpop.f32.mrb[0].mxu0
        %v2153 = vadd.f32 %v1974, %v2152
        %v2154 = vpop.f32.mrb[0].mxu0
        %v2155 = vadd.f32 %v1979, %v2154
        %v2156 = vpop.f32.mrb[0].mxu0
        %v2157 = vadd.f32 %v1979, %v2156
        %2158 = vmatprep.mubr.bf16.mxu0 0
        %2159 = vmatmul.mubr.bf16.gmra.mrb[0].mxu0 %v2089
        %v2160 = vpop.f32.mrb[0].mxu0
        %v2161 = vadd.f32 %v1984, %v2160
        %v2162 = vpop.f32.mrb[0].mxu0
        %v2163 = vadd.f32 %v1984, %v2162
        %v2164 = vpop.f32.mrb[0].mxu0
        %v2165 = vadd.f32 %v1989, %v2164
        %v2166 = vpop.f32.mrb[0].mxu0
        %v2167 = vadd.f32 %v1989, %v2166
        %2168 = vmatprep.mubr.bf16.mxu0 0
        %2169 = vmatmul.mubr.bf16.gmra.mrb[0].mxu0 %v2092
        %v2170 = vpop.f32.mrb[0].mxu0
        %v2171 = vadd.f32 %v1994, %v2170
        %v2172 = vpop.f32.mrb[0].mxu0
        %v2173 = vadd.f32 %v1994, %v2172
        %v2174 = vpop.f32.mrb[0].mxu0
        %v2175 = vadd.f32 %v1999, %v2174
        %v2176 = vpop.f32.mrb[0].mxu0
        %v2177 = vadd.f32 %v1999, %v2176
        %2178 = vmatprep.mubr.bf16.mxu0 0
        %2179 = vmatmul.mubr.bf16.gmra.mrb[0].mxu0 %v2095
        %v2180 = vpop.f32.mrb[0].mxu0
        %v2181 = vadd.f32 %v2004, %v2180
        %v2182 = vpop.f32.mrb[0].mxu0
        %v2183 = vadd.f32 %v2004, %v2182
        %v2184 = vpop.f32.mrb[0].mxu0
        %v2185 = vadd.f32 %v2009, %v2184
        %v2186 = vpop.f32.mrb[0].mxu0
        %v2187 = vadd.f32 %v2009, %v2186
        %2188 = vmatprep.mubr.bf16.mxu0 0
        %2189 = vmatmul.mubr.bf16.gmra.mrb[0].mxu0 %v2098
        %v2190 = vpop.f32.mrb[0].mxu0
        %v2191 = vadd.f32 %v2014, %v2190
        %v2192 = vpop.f32.mrb[0].mxu0
        %v2193 = vadd.f32 %v2014, %v2192
        %v2194 = vpop.f32.mrb[0].mxu0
        %v2195 = vadd.f32 %v2019, %v2194
        %v2196 = vpop.f32.mrb[0].mxu0
        %v2197 = vadd.f32 %v2019, %v2196
        %2198 = vmatprep.mubr.bf16.mxu0 0
        %2199 = vmatmul.mubr.bf16.gmra.mrb[0].mxu0 %v2101
        %v2200 = vpop.f32.mrb[0].mxu0
        %v2201 = vadd.f32 %v2024, %v2200
        %v2202 = vpop.f32.mrb[0].mxu0
        %v2203 = vadd.f32 %v2024, %v2202
        %v2204 = vpop.f32.mrb[0].mxu0
        %v2205 = vadd.f32 %v2029, %v2204
        %v2206 = vpop.f32.mrb[0].mxu0
        %v2207 = vadd.f32 %v2029, %v2206
        %2208 = vmatprep.mubr.bf16.mxu0 0
        %2209 = vmatmul.mubr.bf16.gmra.mrb[0].mxu0 %v2104
        %v2210 = vpop.f32.mrb[0].mxu0
        %v2211 = vadd.f32 %v2034, %v2210
        %v2212 = vpop.f32.mrb[0].mxu0
        %v2213 = vadd.f32 %v2034, %v2212
        %v2214 = vpop.f32.mrb[0].mxu0
        %v2215 = vadd.f32 %v2039, %v2214
        %v2216 = vpop.f32.mrb[0].mxu0
        %v2217 = vadd.f32 %v2039, %v2216
        %2218 = vdwg.mxu0
        %v2219 = vmax.f32 %v2141, 0.0
        %v2220 = vmax.f32 %v2143, 0.0
        %v2221 = vmax.f32 %v2145, 0.0
        %v2222 = vmax.f32 %v2147, 0.0
        %v2223 = vmax.f32 %v2151, 0.0
        %v2224 = vmax.f32 %v2153, 0.0
        %v2225 = vmax.f32 %v2155, 0.0
        %v2226 = vmax.f32 %v2157, 0.0
        %v2227 = vmax.f32 %v2161, 0.0
        %v2228 = vmax.f32 %v2163, 0.0
        %v2229 = vmax.f32 %v2165, 0.0
        %v2230 = vmax.f32 %v2167, 0.0
        %v2231 = vmax.f32 %v2171, 0.0
        %v2232 = vmax.f32 %v2173, 0.0
        %v2233 = vmax.f32 %v2175, 0.0
        %v2234 = vmax.f32 %v2177, 0.0
        %v2235 = vmax.f32 %v2181, 0.0
        %v2236 = vmax.f32 %v2183, 0.0
        %v2237 = vmax.f32 %v2185, 0.0
        %v2238 = vmax.f32 %v2187, 0.0
        %v2239 = vmax.f32 %v2191, 0.0
        %v2240 = vmax.f32 %v2193, 0.0
        %v2241 = vmax.f32 %v2195, 0.0
        %v2242 = vmax.f32 %v2197, 0.0
        %v2243 = vmax.f32 %v2201, 0.0
        %v2244 = vmax.f32 %v2203, 0.0
        %v2245 = vmax.f32 %v2205, 0.0
        %v2246 = vmax.f32 %v2207, 0.0
        %v2247 = vmax.f32 %v2211, 0.0
        %v2248 = vmax.f32 %v2213, 0.0
        %v2249 = vmax.f32 %v2215, 0.0
        %v2250 = vmax.f32 %v2217, 0.0
        %v2251 = vpack.c.bf16 %v2221, %v2219
        %v2252 = vpack.c.bf16 %v2222, %v2220
        %v2253 = vpack.c.bf16 %v2225, %v2223
        %v2254 = vpack.c.bf16 %v2226, %v2224
        %v2255 = vpack.c.bf16 %v2229, %v2227
        %v2256 = vpack.c.bf16 %v2230, %v2228
        %v2257 = vpack.c.bf16 %v2233, %v2231
        %v2258 = vpack.c.bf16 %v2234, %v2232
        %v2259 = vpack.c.bf16 %v2237, %v2235
        %v2260 = vpack.c.bf16 %v2238, %v2236
        %v2261 = vpack.c.bf16 %v2241, %v2239
        %v2262 = vpack.c.bf16 %v2242, %v2240
        %v2263 = vpack.c.bf16 %v2245, %v2243
        %v2264 = vpack.c.bf16 %v2246, %v2244
        %v2265 = vpack.c.bf16 %v2249, %v2247
        %v2266 = vpack.c.bf16 %v2250, %v2248
        %2267 = vset.pattern.permute.xlu0 6
        %2268 = vperm.xlu0 %2267, %v1937
        %v2269 = vpop.permute.xlu0 %2268
        %2271 = vmatprep.subr.bf16.mxu0 %v2252
        %2272 = vmatpush1.bf16.msra.mxu0 %v2251
        %2273 = vmatprep.subr.bf16.mxu0 %v2254
        %2274 = vmatpush1.bf16.msra.mxu0 %v2253
        %2275 = vmatprep.subr.bf16.mxu0 %v2256
        %2276 = vmatpush1.bf16.msra.mxu0 %v2255
        %2277 = vmatprep.subr.bf16.mxu0 %v2258
        %2278 = vmatpush1.bf16.msra.mxu0 %v2257
        %2279 = vmatprep.subr.bf16.mxu0 %v2260
        %2280 = vmatpush1.bf16.msra.mxu0 %v2259
        %2281 = vmatprep.subr.bf16.mxu0 %v2262
        %2282 = vmatpush1.bf16.msra.mxu0 %v2261
        %2283 = vmatprep.subr.bf16.mxu0 %v2264
        %2284 = vmatpush1.bf16.msra.mxu0 %v2263
        %2285 = vmatprep.subr.bf16.mxu0 %v2266
        %2286 = vmatpush1.bf16.msra.mxu0 %v2265
        %2287 = vmatprep.subr.bf16.mxu0 0
        %2288 = vmatpush1.bf16.msra.mxu0 0
        %2289 = vmatprep.subr.bf16.mxu0 0
        %2290 = vmatpush1.bf16.msra.mxu0 0
        %2291 = vmatprep.subr.bf16.mxu0 0
        %2292 = vmatpush1.bf16.msra.mxu0 0
        %2293 = vmatprep.subr.bf16.mxu0 0
        %2294 = vmatpush1.bf16.msra.mxu0 0
        %2295 = vmatprep.subr.bf16.mxu0 0
        %2296 = vmatpush1.bf16.msra.mxu0 0
        %2297 = vmatprep.subr.bf16.mxu0 0
        %2298 = vmatpush1.bf16.msra.mxu0 0
        %2299 = vmatprep.subr.bf16.mxu0 0
        %2300 = vmatpush1.bf16.msra.mxu0 0
        %2301 = vmatprep.subr.bf16.mxu0 0
        %2302 = vmatpush1.bf16.msra.mxu0 0
        %2303 = vmatprep.mubr.bf16.mxu0 0
        %2304 = vmatmul.mubr.bf16.gmra.mrb[0].mxu0 %v1499
        %v2305 = vpop.f32.mrb[0].mxu0
        %v2306 = vadd.f32 %v2269, %v2305
        %v2307 = vpop.f32.mrb[0].mxu0
        %v2308 = vadd.f32 %v2269, %v2307
        %v2309 = vpop.f32.mrb[0].mxu0
        %v2310 = vpop.f32.mrb[0].mxu0
        %2311 = vdwg.mxu0
        %2312 = vst [vmem:[%s288] sm:$0xff] %v2306
        %s2313 = scalar_lea.vmem %s288, 8 [#allocation8]
        %2314 = vst [vmem:[%s2313] sm:$0xff] %v2308
        %s2315 = sand.u32 %s146, 1
        %s2316 = scalar_lea.sflag [#allocation4], %s2315
        %s2317 = sand.u32 %s146, 1
        %s2318 = smul.addr %s2317, 16
        %s2319 = scalar_lea.vmem [#allocation8], %s2318
        // Predicated region
        $region53: #{tpu_custom_call.1} parent=39 // pred_check
          %p2320 = pneg %p156
        $region54: #{tpu_custom_call.1} parent=39 // pred_check_branch
          %2322 = sbr.rel (%p2320) target = $region56
        $region55: #{tpu_custom_call.1} parent=39 // pred_region
          %s2323 = smul.u32 2, %s23
          %s2325 = ssub.s32 256, 256
          %2326 = vsyncadd %s2316, %s2325
          %s2327 = smul.addr %s2323, 128
          %s2328 = scalar_lea.hbm %s5, %s2327
          %s2329 = sshll.u32 %s2319, 4
          %s2330 = int_to_ptr.vmem [resolvable:$true] %s2329
          %2335 = dma.vmem_to_hbm [thread:$0]  %s2330, 256, %s2328, %s2316, 128, 128, 8
        $region56: #{tpu_custom_call.1} parent=39 // pred_fallthru
          _
      $region40: #{tpu_custom_call.1} parent=5 // pred_fallthru
        _
      %p2336 = scmp.le.s32.totalorder 2, %s18
      // Predicated region
      $region57: #{tpu_custom_call.1} parent=5 // pred_check
        %p2337 = pneg %p2336
      $region58: #{tpu_custom_call.1} parent=5 // pred_check_branch
        %2339 = sbr.rel (%p2337) target = $region60
      $region59: #{tpu_custom_call.1} parent=5 // pred_region
        %s2340 = ssub.s32 %s18, 2
        // Predicated region
        $region61: #{tpu_custom_call.1} parent=59 // pred_check
          %p2341 = pneg %p162
        $region62: #{tpu_custom_call.1} parent=59 // pred_check_branch
          %2343 = sbr.rel (%p2341) target = $region64
        $region63: #{tpu_custom_call.1} parent=59 // pred_region
          %s2344 = sand.u32 %s147, 1
          %s2345 = scalar_lea.sflag [#allocation4], %s2344
          %s2346 = sand.u32 %s147, 1
          %s2347 = smul.addr %s2346, 16
          %s2348 = scalar_lea.vmem [#allocation8], %s2347
          %2349 = dma.done %s2345, 256
        $region64: #{tpu_custom_call.1} parent=59 // pred_fallthru
          _
      $region60: #{tpu_custom_call.1} parent=5 // pred_fallthru
        _
    $region6: #{tpu_custom_call.1} parent=1 // loop_footer
      %s22 = sadd.s32 1, %s18
    $region7: #{tpu_custom_call.1} parent=1 // loop_footer_branch
      %17 = sbr.rel target = $region3
    $region8: #{tpu_custom_call.1} parent=1 // loop_exit
      _
    %2350 = vsyncpa [#allocation3], 1
    %s2351 = scalar_lea.sflag [#allocation3], 1
    %2352 = vsyncpa %s2351, 1
    %2353 = vsyncpa [#allocation6], 1
    %2354 = vsyncpa [#allocation4], 1
    %s2355 = scalar_lea.sflag [#allocation4], 1
    %2356 = vsyncpa %s2355, 1

</llo_original>
